<compile_context>
chip_gen: v7x
topology: tpu7x:2x2x1
jax: 0.10.0
libtpu: 0.0.40
codegen_flags: <defaults>
</compile_context>

<pallas_src>
import functools

import numpy as np
import jax
import jax.numpy as jnp
from jax.experimental import pallas as pl
from jax.experimental.pallas import tpu as pltpu

CIN = 4                       # input channels
NUM_CLASSES = 5
NUM_ANCHORS = 3
V = 5 + NUM_CLASSES           # per-anchor vector: [conf, tx, ty, tw, th, cls...]
COUT = NUM_ANCHORS * V        # head output channels (45)
FIELDS = 8                    # conf, x1, y1, x2, y2, classify, raw_conf, pad
XROWS = CIN + 2               # feature channels + (h_idx, w_idx) planes
OROWS = NUM_ANCHORS * FIELDS  # 24


def _round_up(x, m):
    return (x + m - 1) // m * m


# ------------------------- fused Pallas kernel -------------------------

def _fused_head_kernel(x_ref, w_ref, b_ref, anc_ref, o_ref, *, t):
    """Fused 1x1-conv head + YOLO box parse, field-major / lane-dense.

    x_ref  : (XROWS, TILE) VMEM   rows [0:CIN] input channels (cells in lanes),
                                  row CIN = h index, row CIN+1 = w index.
    w_ref  : (CIN, COUT)   SMEM   1x1-conv weights.
    b_ref  : (COUT,)       SMEM   1x1-conv bias.
    anc_ref: (NUM_ANCHORS, 2) SMEM  anchor (w, h).
    o_ref  : (OROWS, TILE) VMEM   per anchor: [conf, x1, y1, x2, y2, cls,
                                               raw_conf, 0].
    """
    x = x_ref[...]                           # (XROWS, TILE)
    hh = x[CIN:CIN + 1, :]                   # (1, TILE) grid row index
    ww = x[CIN + 1:CIN + 2, :]               # (1, TILE) grid col index

    def chan(co):
        # 1x1 conv for one output channel.  K=4 contraction as 4 VPU FMAs with
        # SMEM scalar broadcasts -- the MXU would use <2% of its rows here.
        acc = x[0:1, :] * w_ref[0, co]
        for ci in range(1, CIN):
            acc = acc + x[ci:ci + 1, :] * w_ref[ci, co]
        return acc + b_ref[co]

    rows = []
    for a in range(NUM_ANCHORS):
        base = a * V
        raw_conf = chan(base + 0)
        tx = chan(base + 1)
        ty = chan(base + 2)
        tw = chan(base + 3)
        th = chan(base + 4)

        conf = jax.nn.sigmoid(raw_conf)
        cy = (hh + jax.nn.sigmoid(ty)) * t
        cx = (ww + jax.nn.sigmoid(tx)) * t
        bw = anc_ref[a, 0] * jnp.exp(tw)
        bh = anc_ref[a, 1] * jnp.exp(th)
        x1 = cx - bw * 0.5
        y1 = cy - bh * 0.5
        x2 = x1 + bw
        y2 = y1 + bh

        # argmax over class logits (first index achieving the max).
        best_val = chan(base + 5)
        best_idx = jnp.zeros_like(best_val)
        for k in range(1, NUM_CLASSES):
            ck = chan(base + 5 + k)
            better = ck > best_val
            best_idx = jnp.where(better, jnp.float32(k), best_idx)
            best_val = jnp.where(better, ck, best_val)

        rows += [conf, x1, y1, x2, y2, best_idx, raw_conf,
                 jnp.zeros_like(conf)]

    # Single full-width, sublane-aligned store (no masked partial stores).
    o_ref[...] = jnp.concatenate(rows, axis=0)


@functools.lru_cache(maxsize=None)
def _build_fused_call(m_pad, tile, t):
    """Cached pallas_call builder so repeated forward() calls reuse tracing."""
    num_tiles = m_pad // tile
    kern = functools.partial(_fused_head_kernel, t=float(t))
    return pl.pallas_call(
        kern,
        out_shape=jax.ShapeDtypeStruct((OROWS, m_pad), jnp.float32),
        grid=(num_tiles,),
        in_specs=[
            pl.BlockSpec((XROWS, tile), lambda i: (0, i)),
            pl.BlockSpec(memory_space=pltpu.MemorySpace.SMEM),   # weights
            pl.BlockSpec(memory_space=pltpu.MemorySpace.SMEM),   # bias
            pl.BlockSpec(memory_space=pltpu.MemorySpace.SMEM),   # anchors
        ],
        out_specs=pl.BlockSpec((OROWS, tile), lambda i: (0, i)),
        compiler_params=pltpu.CompilerParams(
            dimension_semantics=("parallel",)),   # v7x: shard cell tiles on 2 TCs
    )


# ------------------------- Detector -------------------------

class Detector:
    # scale key -> (spatial stride for the synthetic backbone, parse stride t)
    SCALES = {13: (4, 32), 26: (2, 16), 52: (1, 8)}

    def __init__(self, key):
        keys = jax.random.split(key, 6)
        s = 0.5
        self.params = {
            13: (jax.random.normal(keys[0], (CIN, COUT), jnp.float32) * s,
                 jax.random.normal(keys[1], (COUT,), jnp.float32) * s),
            26: (jax.random.normal(keys[2], (CIN, COUT), jnp.float32) * s,
                 jax.random.normal(keys[3], (COUT,), jnp.float32) * s),
            52: (jax.random.normal(keys[4], (CIN, COUT), jnp.float32) * s,
                 jax.random.normal(keys[5], (COUT,), jnp.float32) * s),
        }
        self._hw_cache = {}   # hoisted per-shape h/w index planes

    def _hw_planes(self, n, hs, ws):
        key = (n, hs, ws)
        if key not in self._hw_cache:
            h = np.broadcast_to(
                np.arange(hs, dtype=np.float32)[None, :, None], (n, hs, ws))
            w = np.broadcast_to(
                np.arange(ws, dtype=np.float32)[None, None, :], (n, hs, ws))
            planes = np.stack([h.reshape(-1), w.reshape(-1)], axis=0)
            self._hw_cache[key] = jnp.asarray(planes)         # (2, n*hs*ws)
        return self._hw_cache[key]

    def _scale_rows(self, x_nhwc, scale_key, anchors):
        stride, t = self.SCALES[scale_key]
        feat = x_nhwc[:, ::stride, ::stride, :]               # (N, Hs, Ws, CIN)
        n, hs, ws, _ = feat.shape
        m_cells = n * hs * ws

        # Field-major, lane-dense kernel input: (CIN+2, M_pad).
        feat_t = jnp.transpose(feat.reshape(m_cells, CIN))    # (CIN, M)
        x_t = jnp.concatenate([feat_t, self._hw_planes(n, hs, ws)], axis=0)

        m_pad0 = _round_up(m_cells, 128)
        tile = min(512, m_pad0)
        m_pad = _round_up(m_cells, tile)
        if m_pad != m_cells:
            x_t = jnp.pad(x_t, ((0, 0), (0, m_pad - m_cells)))

        w, b = self.params[scale_key]
        anc = jnp.asarray(anchors[scale_key], jnp.float32)    # (3, 2)
        out_t = _build_fused_call(m_pad, tile, t)(x_t, w, b, anc)  # (24, M_pad)

        # Reassemble to torch.nonzero row order: (n, h, w, anchor) row-major.
        out = out_t[:, :m_cells].reshape(NUM_ANCHORS, FIELDS, m_cells)
        out = jnp.transpose(out, (2, 0, 1)).reshape(
            m_cells * NUM_ANCHORS, FIELDS)
        return out    # columns: [conf, x1, y1, x2, y2, cls, raw_conf, 0]

    def forward(self, x_nchw, threshold, anchors):
        x_nhwc = jnp.transpose(x_nchw, (0, 2, 3, 1)).astype(jnp.float32)
        per_scale = [self._scale_rows(x_nhwc, k, anchors) for k in (13, 26, 52)]
        all_rows = jnp.concatenate(per_scale, axis=0)    # one device tensor
        all_rows = jax.block_until_ready(all_rows)
        rows_np = np.asarray(all_rows)                   # single D->H transfer
        # _filter mask uses the RAW (pre-sigmoid) confidence, as in reference.
        keep = rows_np[:, 6] > threshold
        return rows_np[keep][:, :6]                      # (num_detections, 6)


# ------------------------- main -------------------------

if __name__ == "__main__":
    key = jax.random.PRNGKey(0)
    k_x, k_params = jax.random.split(key)

    x = jax.random.normal(k_x, (2, CIN, 16, 16), jnp.float32)   # NCHW input
    anchors = {
        13: [[116.0, 90.0], [156.0, 198.0], [373.0, 326.0]],
        26: [[30.0, 61.0], [62.0, 45.0], [59.0, 119.0]],
        52: [[10.0, 13.0], [16.0, 30.0], [33.0, 23.0]],
    }

    det = Detector(k_params)
    boxes = det.forward(x, threshold=0.0, anchors=anchors)
    assert boxes.ndim == 2 and boxes.shape[1] == 6
    print("KERNEL_OK")
</pallas_src>

<mosaic_0001>
module attributes {stable_mosaic.version = 11 : i64} {
  func.func @_fused_head_kernel(%arg0: i32, %arg1: memref<6x128xf32, #tpu.memory_space<vmem>>, %arg2: memref<4x30xf32, #tpu.memory_space<smem>>, %arg3: memref<30xf32, #tpu.memory_space<smem>>, %arg4: memref<3x2xf32, #tpu.memory_space<smem>>, %arg5: memref<24x128xf32, #tpu.memory_space<vmem>>) attributes {dimension_semantics = [#tpu.dimension_semantics<parallel>], iteration_bounds = array<i64: 1>, scalar_prefetch = 0 : i64, scratch_operands = 0 : i64, tpu.core_type = #tpu.core_type<tc>, window_params = [{transform_indices = @transform_0, window_bounds = array<i64: 6, 128>}, {transform_indices = @transform_1, window_bounds = array<i64: 4, 30>}, {transform_indices = @transform_2, window_bounds = array<i64: 30>}, {transform_indices = @transform_3, window_bounds = array<i64: 3, 2>}, {transform_indices = @transform_4, window_bounds = array<i64: 24, 128>}]} {
    %c0 = arith.constant 0 : index
    %c0_0 = arith.constant 0 : index
    %0 = vector.load %arg1[%c0, %c0_0] : memref<6x128xf32, #tpu.memory_space<vmem>>, vector<6x128xf32>
    %1 = vector.extract_strided_slice %0 {offsets = [4, 0], sizes = [1, 128], strides = [1, 1]} : vector<6x128xf32> to vector<1x128xf32>
    %2 = vector.extract_strided_slice %0 {offsets = [5, 0], sizes = [1, 128], strides = [1, 1]} : vector<6x128xf32> to vector<1x128xf32>
    %3 = vector.extract_strided_slice %0 {offsets = [0, 0], sizes = [1, 128], strides = [1, 1]} : vector<6x128xf32> to vector<1x128xf32>
    %c0_1 = arith.constant 0 : index
    %c0_2 = arith.constant 0 : index
    %4 = memref.load %arg2[%c0_1, %c0_2] : memref<4x30xf32, #tpu.memory_space<smem>>
    %5 = vector.broadcast %4 : f32 to vector<1x128xf32>
    %6 = arith.mulf %3, %5 : vector<1x128xf32>
    %7 = vector.extract_strided_slice %0 {offsets = [1, 0], sizes = [1, 128], strides = [1, 1]} : vector<6x128xf32> to vector<1x128xf32>
    %c1 = arith.constant 1 : index
    %c0_3 = arith.constant 0 : index
    %8 = memref.load %arg2[%c1, %c0_3] : memref<4x30xf32, #tpu.memory_space<smem>>
    %9 = vector.broadcast %8 : f32 to vector<1x128xf32>
    %10 = arith.mulf %7, %9 : vector<1x128xf32>
    %11 = arith.addf %6, %10 : vector<1x128xf32>
    %12 = vector.extract_strided_slice %0 {offsets = [2, 0], sizes = [1, 128], strides = [1, 1]} : vector<6x128xf32> to vector<1x128xf32>
    %c2 = arith.constant 2 : index
    %c0_4 = arith.constant 0 : index
    %13 = memref.load %arg2[%c2, %c0_4] : memref<4x30xf32, #tpu.memory_space<smem>>
    %14 = vector.broadcast %13 : f32 to vector<1x128xf32>
    %15 = arith.mulf %12, %14 : vector<1x128xf32>
    %16 = arith.addf %11, %15 : vector<1x128xf32>
    %17 = vector.extract_strided_slice %0 {offsets = [3, 0], sizes = [1, 128], strides = [1, 1]} : vector<6x128xf32> to vector<1x128xf32>
    %c3 = arith.constant 3 : index
    %c0_5 = arith.constant 0 : index
    %18 = memref.load %arg2[%c3, %c0_5] : memref<4x30xf32, #tpu.memory_space<smem>>
    %19 = vector.broadcast %18 : f32 to vector<1x128xf32>
    %20 = arith.mulf %17, %19 : vector<1x128xf32>
    %21 = arith.addf %16, %20 : vector<1x128xf32>
    %c0_6 = arith.constant 0 : index
    %22 = memref.load %arg3[%c0_6] : memref<30xf32, #tpu.memory_space<smem>>
    %23 = vector.broadcast %22 : f32 to vector<1x128xf32>
    %24 = arith.addf %21, %23 : vector<1x128xf32>
    %25 = vector.extract_strided_slice %0 {offsets = [0, 0], sizes = [1, 128], strides = [1, 1]} : vector<6x128xf32> to vector<1x128xf32>
    %c0_7 = arith.constant 0 : index
    %c1_8 = arith.constant 1 : index
    %26 = memref.load %arg2[%c0_7, %c1_8] : memref<4x30xf32, #tpu.memory_space<smem>>
    %27 = vector.broadcast %26 : f32 to vector<1x128xf32>
    %28 = arith.mulf %25, %27 : vector<1x128xf32>
    %29 = vector.extract_strided_slice %0 {offsets = [1, 0], sizes = [1, 128], strides = [1, 1]} : vector<6x128xf32> to vector<1x128xf32>
    %c1_9 = arith.constant 1 : index
    %c1_10 = arith.constant 1 : index
    %30 = memref.load %arg2[%c1_9, %c1_10] : memref<4x30xf32, #tpu.memory_space<smem>>
    %31 = vector.broadcast %30 : f32 to vector<1x128xf32>
    %32 = arith.mulf %29, %31 : vector<1x128xf32>
    %33 = arith.addf %28, %32 : vector<1x128xf32>
    %34 = vector.extract_strided_slice %0 {offsets = [2, 0], sizes = [1, 128], strides = [1, 1]} : vector<6x128xf32> to vector<1x128xf32>
    %c2_11 = arith.constant 2 : index
    %c1_12 = arith.constant 1 : index
    %35 = memref.load %arg2[%c2_11, %c1_12] : memref<4x30xf32, #tpu.memory_space<smem>>
    %36 = vector.broadcast %35 : f32 to vector<1x128xf32>
    %37 = arith.mulf %34, %36 : vector<1x128xf32>
    %38 = arith.addf %33, %37 : vector<1x128xf32>
    %39 = vector.extract_strided_slice %0 {offsets = [3, 0], sizes = [1, 128], strides = [1, 1]} : vector<6x128xf32> to vector<1x128xf32>
    %c3_13 = arith.constant 3 : index
    %c1_14 = arith.constant 1 : index
    %40 = memref.load %arg2[%c3_13, %c1_14] : memref<4x30xf32, #tpu.memory_space<smem>>
    %41 = vector.broadcast %40 : f32 to vector<1x128xf32>
    %42 = arith.mulf %39, %41 : vector<1x128xf32>
    %43 = arith.addf %38, %42 : vector<1x128xf32>
    %c1_15 = arith.constant 1 : index
    %44 = memref.load %arg3[%c1_15] : memref<30xf32, #tpu.memory_space<smem>>
    %45 = vector.broadcast %44 : f32 to vector<1x128xf32>
    %46 = arith.addf %43, %45 : vector<1x128xf32>
    %47 = vector.extract_strided_slice %0 {offsets = [0, 0], sizes = [1, 128], strides = [1, 1]} : vector<6x128xf32> to vector<1x128xf32>
    %c0_16 = arith.constant 0 : index
    %c2_17 = arith.constant 2 : index
    %48 = memref.load %arg2[%c0_16, %c2_17] : memref<4x30xf32, #tpu.memory_space<smem>>
    %49 = vector.broadcast %48 : f32 to vector<1x128xf32>
    %50 = arith.mulf %47, %49 : vector<1x128xf32>
    %51 = vector.extract_strided_slice %0 {offsets = [1, 0], sizes = [1, 128], strides = [1, 1]} : vector<6x128xf32> to vector<1x128xf32>
    %c1_18 = arith.constant 1 : index
    %c2_19 = arith.constant 2 : index
    %52 = memref.load %arg2[%c1_18, %c2_19] : memref<4x30xf32, #tpu.memory_space<smem>>
    %53 = vector.broadcast %52 : f32 to vector<1x128xf32>
    %54 = arith.mulf %51, %53 : vector<1x128xf32>
    %55 = arith.addf %50, %54 : vector<1x128xf32>
    %56 = vector.extract_strided_slice %0 {offsets = [2, 0], sizes = [1, 128], strides = [1, 1]} : vector<6x128xf32> to vector<1x128xf32>
    %c2_20 = arith.constant 2 : index
    %c2_21 = arith.constant 2 : index
    %57 = memref.load %arg2[%c2_20, %c2_21] : memref<4x30xf32, #tpu.memory_space<smem>>
    %58 = vector.broadcast %57 : f32 to vector<1x128xf32>
    %59 = arith.mulf %56, %58 : vector<1x128xf32>
    %60 = arith.addf %55, %59 : vector<1x128xf32>
    %61 = vector.extract_strided_slice %0 {offsets = [3, 0], sizes = [1, 128], strides = [1, 1]} : vector<6x128xf32> to vector<1x128xf32>
    %c3_22 = arith.constant 3 : index
    %c2_23 = arith.constant 2 : index
    %62 = memref.load %arg2[%c3_22, %c2_23] : memref<4x30xf32, #tpu.memory_space<smem>>
    %63 = vector.broadcast %62 : f32 to vector<1x128xf32>
    %64 = arith.mulf %61, %63 : vector<1x128xf32>
    %65 = arith.addf %60, %64 : vector<1x128xf32>
    %c2_24 = arith.constant 2 : index
    %66 = memref.load %arg3[%c2_24] : memref<30xf32, #tpu.memory_space<smem>>
    %67 = vector.broadcast %66 : f32 to vector<1x128xf32>
    %68 = arith.addf %65, %67 : vector<1x128xf32>
    %69 = vector.extract_strided_slice %0 {offsets = [0, 0], sizes = [1, 128], strides = [1, 1]} : vector<6x128xf32> to vector<1x128xf32>
    %c0_25 = arith.constant 0 : index
    %c3_26 = arith.constant 3 : index
    %70 = memref.load %arg2[%c0_25, %c3_26] : memref<4x30xf32, #tpu.memory_space<smem>>
    %71 = vector.broadcast %70 : f32 to vector<1x128xf32>
    %72 = arith.mulf %69, %71 : vector<1x128xf32>
    %73 = vector.extract_strided_slice %0 {offsets = [1, 0], sizes = [1, 128], strides = [1, 1]} : vector<6x128xf32> to vector<1x128xf32>
    %c1_27 = arith.constant 1 : index
    %c3_28 = arith.constant 3 : index
    %74 = memref.load %arg2[%c1_27, %c3_28] : memref<4x30xf32, #tpu.memory_space<smem>>
    %75 = vector.broadcast %74 : f32 to vector<1x128xf32>
    %76 = arith.mulf %73, %75 : vector<1x128xf32>
    %77 = arith.addf %72, %76 : vector<1x128xf32>
    %78 = vector.extract_strided_slice %0 {offsets = [2, 0], sizes = [1, 128], strides = [1, 1]} : vector<6x128xf32> to vector<1x128xf32>
    %c2_29 = arith.constant 2 : index
    %c3_30 = arith.constant 3 : index
    %79 = memref.load %arg2[%c2_29, %c3_30] : memref<4x30xf32, #tpu.memory_space<smem>>
    %80 = vector.broadcast %79 : f32 to vector<1x128xf32>
    %81 = arith.mulf %78, %80 : vector<1x128xf32>
    %82 = arith.addf %77, %81 : vector<1x128xf32>
    %83 = vector.extract_strided_slice %0 {offsets = [3, 0], sizes = [1, 128], strides = [1, 1]} : vector<6x128xf32> to vector<1x128xf32>
    %c3_31 = arith.constant 3 : index
    %c3_32 = arith.constant 3 : index
    %84 = memref.load %arg2[%c3_31, %c3_32] : memref<4x30xf32, #tpu.memory_space<smem>>
    %85 = vector.broadcast %84 : f32 to vector<1x128xf32>
    %86 = arith.mulf %83, %85 : vector<1x128xf32>
    %87 = arith.addf %82, %86 : vector<1x128xf32>
    %c3_33 = arith.constant 3 : index
    %88 = memref.load %arg3[%c3_33] : memref<30xf32, #tpu.memory_space<smem>>
    %89 = vector.broadcast %88 : f32 to vector<1x128xf32>
    %90 = arith.addf %87, %89 : vector<1x128xf32>
    %91 = vector.extract_strided_slice %0 {offsets = [0, 0], sizes = [1, 128], strides = [1, 1]} : vector<6x128xf32> to vector<1x128xf32>
    %c0_34 = arith.constant 0 : index
    %c4 = arith.constant 4 : index
    %92 = memref.load %arg2[%c0_34, %c4] : memref<4x30xf32, #tpu.memory_space<smem>>
    %93 = vector.broadcast %92 : f32 to vector<1x128xf32>
    %94 = arith.mulf %91, %93 : vector<1x128xf32>
    %95 = vector.extract_strided_slice %0 {offsets = [1, 0], sizes = [1, 128], strides = [1, 1]} : vector<6x128xf32> to vector<1x128xf32>
    %c1_35 = arith.constant 1 : index
    %c4_36 = arith.constant 4 : index
    %96 = memref.load %arg2[%c1_35, %c4_36] : memref<4x30xf32, #tpu.memory_space<smem>>
    %97 = vector.broadcast %96 : f32 to vector<1x128xf32>
    %98 = arith.mulf %95, %97 : vector<1x128xf32>
    %99 = arith.addf %94, %98 : vector<1x128xf32>
    %100 = vector.extract_strided_slice %0 {offsets = [2, 0], sizes = [1, 128], strides = [1, 1]} : vector<6x128xf32> to vector<1x128xf32>
    %c2_37 = arith.constant 2 : index
    %c4_38 = arith.constant 4 : index
    %101 = memref.load %arg2[%c2_37, %c4_38] : memref<4x30xf32, #tpu.memory_space<smem>>
    %102 = vector.broadcast %101 : f32 to vector<1x128xf32>
    %103 = arith.mulf %100, %102 : vector<1x128xf32>
    %104 = arith.addf %99, %103 : vector<1x128xf32>
    %105 = vector.extract_strided_slice %0 {offsets = [3, 0], sizes = [1, 128], strides = [1, 1]} : vector<6x128xf32> to vector<1x128xf32>
    %c3_39 = arith.constant 3 : index
    %c4_40 = arith.constant 4 : index
    %106 = memref.load %arg2[%c3_39, %c4_40] : memref<4x30xf32, #tpu.memory_space<smem>>
    %107 = vector.broadcast %106 : f32 to vector<1x128xf32>
    %108 = arith.mulf %105, %107 : vector<1x128xf32>
    %109 = arith.addf %104, %108 : vector<1x128xf32>
    %c4_41 = arith.constant 4 : index
    %110 = memref.load %arg3[%c4_41] : memref<30xf32, #tpu.memory_space<smem>>
    %111 = vector.broadcast %110 : f32 to vector<1x128xf32>
    %112 = arith.addf %109, %111 : vector<1x128xf32>
    %113 = arith.negf %24 : vector<1x128xf32>
    %114 = math.exp %113 : vector<1x128xf32>
    %cst = arith.constant 1.000000e+00 : f32
    %115 = vector.broadcast %cst : f32 to vector<1x128xf32>
    %116 = arith.addf %115, %114 : vector<1x128xf32>
    %117 = arith.divf %115, %116 : vector<1x128xf32>
    %118 = arith.negf %68 : vector<1x128xf32>
    %119 = math.exp %118 : vector<1x128xf32>
    %cst_42 = arith.constant 1.000000e+00 : f32
    %120 = vector.broadcast %cst_42 : f32 to vector<1x128xf32>
    %121 = arith.addf %120, %119 : vector<1x128xf32>
    %122 = arith.divf %120, %121 : vector<1x128xf32>
    %123 = arith.addf %1, %122 : vector<1x128xf32>
    %cst_43 = arith.constant 3.200000e+01 : f32
    %124 = vector.broadcast %cst_43 : f32 to vector<1x128xf32>
    %125 = arith.mulf %123, %124 : vector<1x128xf32>
    %126 = arith.negf %46 : vector<1x128xf32>
    %127 = math.exp %126 : vector<1x128xf32>
    %cst_44 = arith.constant 1.000000e+00 : f32
    %128 = vector.broadcast %cst_44 : f32 to vector<1x128xf32>
    %129 = arith.addf %128, %127 : vector<1x128xf32>
    %130 = arith.divf %128, %129 : vector<1x128xf32>
    %131 = arith.addf %2, %130 : vector<1x128xf32>
    %cst_45 = arith.constant 3.200000e+01 : f32
    %132 = vector.broadcast %cst_45 : f32 to vector<1x128xf32>
    %133 = arith.mulf %131, %132 : vector<1x128xf32>
    %c0_46 = arith.constant 0 : index
    %c0_47 = arith.constant 0 : index
    %134 = memref.load %arg4[%c0_46, %c0_47] : memref<3x2xf32, #tpu.memory_space<smem>>
    %135 = math.exp %90 : vector<1x128xf32>
    %136 = vector.broadcast %134 : f32 to vector<1x128xf32>
    %137 = arith.mulf %136, %135 : vector<1x128xf32>
    %c0_48 = arith.constant 0 : index
    %c1_49 = arith.constant 1 : index
    %138 = memref.load %arg4[%c0_48, %c1_49] : memref<3x2xf32, #tpu.memory_space<smem>>
    %139 = math.exp %112 : vector<1x128xf32>
    %140 = vector.broadcast %138 : f32 to vector<1x128xf32>
    %141 = arith.mulf %140, %139 : vector<1x128xf32>
    %cst_50 = arith.constant 5.000000e-01 : f32
    %142 = vector.broadcast %cst_50 : f32 to vector<1x128xf32>
    %143 = arith.mulf %137, %142 : vector<1x128xf32>
    %144 = arith.subf %133, %143 : vector<1x128xf32>
    %cst_51 = arith.constant 5.000000e-01 : f32
    %145 = vector.broadcast %cst_51 : f32 to vector<1x128xf32>
    %146 = arith.mulf %141, %145 : vector<1x128xf32>
    %147 = arith.subf %125, %146 : vector<1x128xf32>
    %148 = arith.addf %144, %137 : vector<1x128xf32>
    %149 = arith.addf %147, %141 : vector<1x128xf32>
    %150 = vector.extract_strided_slice %0 {offsets = [0, 0], sizes = [1, 128], strides = [1, 1]} : vector<6x128xf32> to vector<1x128xf32>
    %c0_52 = arith.constant 0 : index
    %c5 = arith.constant 5 : index
    %151 = memref.load %arg2[%c0_52, %c5] : memref<4x30xf32, #tpu.memory_space<smem>>
    %152 = vector.broadcast %151 : f32 to vector<1x128xf32>
    %153 = arith.mulf %150, %152 : vector<1x128xf32>
    %154 = vector.extract_strided_slice %0 {offsets = [1, 0], sizes = [1, 128], strides = [1, 1]} : vector<6x128xf32> to vector<1x128xf32>
    %c1_53 = arith.constant 1 : index
    %c5_54 = arith.constant 5 : index
    %155 = memref.load %arg2[%c1_53, %c5_54] : memref<4x30xf32, #tpu.memory_space<smem>>
    %156 = vector.broadcast %155 : f32 to vector<1x128xf32>
    %157 = arith.mulf %154, %156 : vector<1x128xf32>
    %158 = arith.addf %153, %157 : vector<1x128xf32>
    %159 = vector.extract_strided_slice %0 {offsets = [2, 0], sizes = [1, 128], strides = [1, 1]} : vector<6x128xf32> to vector<1x128xf32>
    %c2_55 = arith.constant 2 : index
    %c5_56 = arith.constant 5 : index
    %160 = memref.load %arg2[%c2_55, %c5_56] : memref<4x30xf32, #tpu.memory_space<smem>>
    %161 = vector.broadcast %160 : f32 to vector<1x128xf32>
    %162 = arith.mulf %159, %161 : vector<1x128xf32>
    %163 = arith.addf %158, %162 : vector<1x128xf32>
    %164 = vector.extract_strided_slice %0 {offsets = [3, 0], sizes = [1, 128], strides = [1, 1]} : vector<6x128xf32> to vector<1x128xf32>
    %c3_57 = arith.constant 3 : index
    %c5_58 = arith.constant 5 : index
    %165 = memref.load %arg2[%c3_57, %c5_58] : memref<4x30xf32, #tpu.memory_space<smem>>
    %166 = vector.broadcast %165 : f32 to vector<1x128xf32>
    %167 = arith.mulf %164, %166 : vector<1x128xf32>
    %168 = arith.addf %163, %167 : vector<1x128xf32>
    %c5_59 = arith.constant 5 : index
    %169 = memref.load %arg3[%c5_59] : memref<30xf32, #tpu.memory_space<smem>>
    %170 = vector.broadcast %169 : f32 to vector<1x128xf32>
    %171 = arith.addf %168, %170 : vector<1x128xf32>
    %cst_60 = arith.constant 0.000000e+00 : f32
    %172 = vector.broadcast %cst_60 : f32 to vector<1x128xf32>
    %173 = vector.extract_strided_slice %0 {offsets = [0, 0], sizes = [1, 128], strides = [1, 1]} : vector<6x128xf32> to vector<1x128xf32>
    %c0_61 = arith.constant 0 : index
    %c6 = arith.constant 6 : index
    %174 = memref.load %arg2[%c0_61, %c6] : memref<4x30xf32, #tpu.memory_space<smem>>
    %175 = vector.broadcast %174 : f32 to vector<1x128xf32>
    %176 = arith.mulf %173, %175 : vector<1x128xf32>
    %177 = vector.extract_strided_slice %0 {offsets = [1, 0], sizes = [1, 128], strides = [1, 1]} : vector<6x128xf32> to vector<1x128xf32>
    %c1_62 = arith.constant 1 : index
    %c6_63 = arith.constant 6 : index
    %178 = memref.load %arg2[%c1_62, %c6_63] : memref<4x30xf32, #tpu.memory_space<smem>>
    %179 = vector.broadcast %178 : f32 to vector<1x128xf32>
    %180 = arith.mulf %177, %179 : vector<1x128xf32>
    %181 = arith.addf %176, %180 : vector<1x128xf32>
    %182 = vector.extract_strided_slice %0 {offsets = [2, 0], sizes = [1, 128], strides = [1, 1]} : vector<6x128xf32> to vector<1x128xf32>
    %c2_64 = arith.constant 2 : index
    %c6_65 = arith.constant 6 : index
    %183 = memref.load %arg2[%c2_64, %c6_65] : memref<4x30xf32, #tpu.memory_space<smem>>
    %184 = vector.broadcast %183 : f32 to vector<1x128xf32>
    %185 = arith.mulf %182, %184 : vector<1x128xf32>
    %186 = arith.addf %181, %185 : vector<1x128xf32>
    %187 = vector.extract_strided_slice %0 {offsets = [3, 0], sizes = [1, 128], strides = [1, 1]} : vector<6x128xf32> to vector<1x128xf32>
    %c3_66 = arith.constant 3 : index
    %c6_67 = arith.constant 6 : index
    %188 = memref.load %arg2[%c3_66, %c6_67] : memref<4x30xf32, #tpu.memory_space<smem>>
    %189 = vector.broadcast %188 : f32 to vector<1x128xf32>
    %190 = arith.mulf %187, %189 : vector<1x128xf32>
    %191 = arith.addf %186, %190 : vector<1x128xf32>
    %c6_68 = arith.constant 6 : index
    %192 = memref.load %arg3[%c6_68] : memref<30xf32, #tpu.memory_space<smem>>
    %193 = vector.broadcast %192 : f32 to vector<1x128xf32>
    %194 = arith.addf %191, %193 : vector<1x128xf32>
    %195 = arith.cmpf ogt, %194, %171 : vector<1x128xf32>
    %cst_69 = arith.constant 1.000000e+00 : f32
    %196 = vector.broadcast %cst_69 : f32 to vector<1x128xf32>
    %197 = arith.select %195, %196, %172 : vector<1x128xi1>, vector<1x128xf32>
    %198 = arith.select %195, %194, %171 : vector<1x128xi1>, vector<1x128xf32>
    %199 = vector.extract_strided_slice %0 {offsets = [0, 0], sizes = [1, 128], strides = [1, 1]} : vector<6x128xf32> to vector<1x128xf32>
    %c0_70 = arith.constant 0 : index
    %c7 = arith.constant 7 : index
    %200 = memref.load %arg2[%c0_70, %c7] : memref<4x30xf32, #tpu.memory_space<smem>>
    %201 = vector.broadcast %200 : f32 to vector<1x128xf32>
    %202 = arith.mulf %199, %201 : vector<1x128xf32>
    %203 = vector.extract_strided_slice %0 {offsets = [1, 0], sizes = [1, 128], strides = [1, 1]} : vector<6x128xf32> to vector<1x128xf32>
    %c1_71 = arith.constant 1 : index
    %c7_72 = arith.constant 7 : index
    %204 = memref.load %arg2[%c1_71, %c7_72] : memref<4x30xf32, #tpu.memory_space<smem>>
    %205 = vector.broadcast %204 : f32 to vector<1x128xf32>
    %206 = arith.mulf %203, %205 : vector<1x128xf32>
    %207 = arith.addf %202, %206 : vector<1x128xf32>
    %208 = vector.extract_strided_slice %0 {offsets = [2, 0], sizes = [1, 128], strides = [1, 1]} : vector<6x128xf32> to vector<1x128xf32>
    %c2_73 = arith.constant 2 : index
    %c7_74 = arith.constant 7 : index
    %209 = memref.load %arg2[%c2_73, %c7_74] : memref<4x30xf32, #tpu.memory_space<smem>>
    %210 = vector.broadcast %209 : f32 to vector<1x128xf32>
    %211 = arith.mulf %208, %210 : vector<1x128xf32>
    %212 = arith.addf %207, %211 : vector<1x128xf32>
    %213 = vector.extract_strided_slice %0 {offsets = [3, 0], sizes = [1, 128], strides = [1, 1]} : vector<6x128xf32> to vector<1x128xf32>
    %c3_75 = arith.constant 3 : index
    %c7_76 = arith.constant 7 : index
    %214 = memref.load %arg2[%c3_75, %c7_76] : memref<4x30xf32, #tpu.memory_space<smem>>
    %215 = vector.broadcast %214 : f32 to vector<1x128xf32>
    %216 = arith.mulf %213, %215 : vector<1x128xf32>
    %217 = arith.addf %212, %216 : vector<1x128xf32>
    %c7_77 = arith.constant 7 : index
    %218 = memref.load %arg3[%c7_77] : memref<30xf32, #tpu.memory_space<smem>>
    %219 = vector.broadcast %218 : f32 to vector<1x128xf32>
    %220 = arith.addf %217, %219 : vector<1x128xf32>
    %221 = arith.cmpf ogt, %220, %198 : vector<1x128xf32>
    %cst_78 = arith.constant 2.000000e+00 : f32
    %222 = vector.broadcast %cst_78 : f32 to vector<1x128xf32>
    %223 = arith.select %221, %222, %197 : vector<1x128xi1>, vector<1x128xf32>
    %224 = arith.select %221, %220, %198 : vector<1x128xi1>, vector<1x128xf32>
    %225 = vector.extract_strided_slice %0 {offsets = [0, 0], sizes = [1, 128], strides = [1, 1]} : vector<6x128xf32> to vector<1x128xf32>
    %c0_79 = arith.constant 0 : index
    %c8 = arith.constant 8 : index
    %226 = memref.load %arg2[%c0_79, %c8] : memref<4x30xf32, #tpu.memory_space<smem>>
    %227 = vector.broadcast %226 : f32 to vector<1x128xf32>
    %228 = arith.mulf %225, %227 : vector<1x128xf32>
    %229 = vector.extract_strided_slice %0 {offsets = [1, 0], sizes = [1, 128], strides = [1, 1]} : vector<6x128xf32> to vector<1x128xf32>
    %c1_80 = arith.constant 1 : index
    %c8_81 = arith.constant 8 : index
    %230 = memref.load %arg2[%c1_80, %c8_81] : memref<4x30xf32, #tpu.memory_space<smem>>
    %231 = vector.broadcast %230 : f32 to vector<1x128xf32>
    %232 = arith.mulf %229, %231 : vector<1x128xf32>
    %233 = arith.addf %228, %232 : vector<1x128xf32>
    %234 = vector.extract_strided_slice %0 {offsets = [2, 0], sizes = [1, 128], strides = [1, 1]} : vector<6x128xf32> to vector<1x128xf32>
    %c2_82 = arith.constant 2 : index
    %c8_83 = arith.constant 8 : index
    %235 = memref.load %arg2[%c2_82, %c8_83] : memref<4x30xf32, #tpu.memory_space<smem>>
    %236 = vector.broadcast %235 : f32 to vector<1x128xf32>
    %237 = arith.mulf %234, %236 : vector<1x128xf32>
    %238 = arith.addf %233, %237 : vector<1x128xf32>
    %239 = vector.extract_strided_slice %0 {offsets = [3, 0], sizes = [1, 128], strides = [1, 1]} : vector<6x128xf32> to vector<1x128xf32>
    %c3_84 = arith.constant 3 : index
    %c8_85 = arith.constant 8 : index
    %240 = memref.load %arg2[%c3_84, %c8_85] : memref<4x30xf32, #tpu.memory_space<smem>>
    %241 = vector.broadcast %240 : f32 to vector<1x128xf32>
    %242 = arith.mulf %239, %241 : vector<1x128xf32>
    %243 = arith.addf %238, %242 : vector<1x128xf32>
    %c8_86 = arith.constant 8 : index
    %244 = memref.load %arg3[%c8_86] : memref<30xf32, #tpu.memory_space<smem>>
    %245 = vector.broadcast %244 : f32 to vector<1x128xf32>
    %246 = arith.addf %243, %245 : vector<1x128xf32>
    %247 = arith.cmpf ogt, %246, %224 : vector<1x128xf32>
    %cst_87 = arith.constant 3.000000e+00 : f32
    %248 = vector.broadcast %cst_87 : f32 to vector<1x128xf32>
    %249 = arith.select %247, %248, %223 : vector<1x128xi1>, vector<1x128xf32>
    %250 = arith.select %247, %246, %224 : vector<1x128xi1>, vector<1x128xf32>
    %251 = vector.extract_strided_slice %0 {offsets = [0, 0], sizes = [1, 128], strides = [1, 1]} : vector<6x128xf32> to vector<1x128xf32>
    %c0_88 = arith.constant 0 : index
    %c9 = arith.constant 9 : index
    %252 = memref.load %arg2[%c0_88, %c9] : memref<4x30xf32, #tpu.memory_space<smem>>
    %253 = vector.broadcast %252 : f32 to vector<1x128xf32>
    %254 = arith.mulf %251, %253 : vector<1x128xf32>
    %255 = vector.extract_strided_slice %0 {offsets = [1, 0], sizes = [1, 128], strides = [1, 1]} : vector<6x128xf32> to vector<1x128xf32>
    %c1_89 = arith.constant 1 : index
    %c9_90 = arith.constant 9 : index
    %256 = memref.load %arg2[%c1_89, %c9_90] : memref<4x30xf32, #tpu.memory_space<smem>>
    %257 = vector.broadcast %256 : f32 to vector<1x128xf32>
    %258 = arith.mulf %255, %257 : vector<1x128xf32>
    %259 = arith.addf %254, %258 : vector<1x128xf32>
    %260 = vector.extract_strided_slice %0 {offsets = [2, 0], sizes = [1, 128], strides = [1, 1]} : vector<6x128xf32> to vector<1x128xf32>
    %c2_91 = arith.constant 2 : index
    %c9_92 = arith.constant 9 : index
    %261 = memref.load %arg2[%c2_91, %c9_92] : memref<4x30xf32, #tpu.memory_space<smem>>
    %262 = vector.broadcast %261 : f32 to vector<1x128xf32>
    %263 = arith.mulf %260, %262 : vector<1x128xf32>
    %264 = arith.addf %259, %263 : vector<1x128xf32>
    %265 = vector.extract_strided_slice %0 {offsets = [3, 0], sizes = [1, 128], strides = [1, 1]} : vector<6x128xf32> to vector<1x128xf32>
    %c3_93 = arith.constant 3 : index
    %c9_94 = arith.constant 9 : index
    %266 = memref.load %arg2[%c3_93, %c9_94] : memref<4x30xf32, #tpu.memory_space<smem>>
    %267 = vector.broadcast %266 : f32 to vector<1x128xf32>
    %268 = arith.mulf %265, %267 : vector<1x128xf32>
    %269 = arith.addf %264, %268 : vector<1x128xf32>
    %c9_95 = arith.constant 9 : index
    %270 = memref.load %arg3[%c9_95] : memref<30xf32, #tpu.memory_space<smem>>
    %271 = vector.broadcast %270 : f32 to vector<1x128xf32>
    %272 = arith.addf %269, %271 : vector<1x128xf32>
    %273 = arith.cmpf ogt, %272, %250 : vector<1x128xf32>
    %cst_96 = arith.constant 4.000000e+00 : f32
    %274 = vector.broadcast %cst_96 : f32 to vector<1x128xf32>
    %275 = arith.select %273, %274, %249 : vector<1x128xi1>, vector<1x128xf32>
    %cst_97 = arith.constant 0.000000e+00 : f32
    %276 = vector.broadcast %cst_97 : f32 to vector<1x128xf32>
    %277 = vector.extract_strided_slice %0 {offsets = [0, 0], sizes = [1, 128], strides = [1, 1]} : vector<6x128xf32> to vector<1x128xf32>
    %c0_98 = arith.constant 0 : index
    %c10 = arith.constant 10 : index
    %278 = memref.load %arg2[%c0_98, %c10] : memref<4x30xf32, #tpu.memory_space<smem>>
    %279 = vector.broadcast %278 : f32 to vector<1x128xf32>
    %280 = arith.mulf %277, %279 : vector<1x128xf32>
    %281 = vector.extract_strided_slice %0 {offsets = [1, 0], sizes = [1, 128], strides = [1, 1]} : vector<6x128xf32> to vector<1x128xf32>
    %c1_99 = arith.constant 1 : index
    %c10_100 = arith.constant 10 : index
    %282 = memref.load %arg2[%c1_99, %c10_100] : memref<4x30xf32, #tpu.memory_space<smem>>
    %283 = vector.broadcast %282 : f32 to vector<1x128xf32>
    %284 = arith.mulf %281, %283 : vector<1x128xf32>
    %285 = arith.addf %280, %284 : vector<1x128xf32>
    %286 = vector.extract_strided_slice %0 {offsets = [2, 0], sizes = [1, 128], strides = [1, 1]} : vector<6x128xf32> to vector<1x128xf32>
    %c2_101 = arith.constant 2 : index
    %c10_102 = arith.constant 10 : index
    %287 = memref.load %arg2[%c2_101, %c10_102] : memref<4x30xf32, #tpu.memory_space<smem>>
    %288 = vector.broadcast %287 : f32 to vector<1x128xf32>
    %289 = arith.mulf %286, %288 : vector<1x128xf32>
    %290 = arith.addf %285, %289 : vector<1x128xf32>
    %291 = vector.extract_strided_slice %0 {offsets = [3, 0], sizes = [1, 128], strides = [1, 1]} : vector<6x128xf32> to vector<1x128xf32>
    %c3_103 = arith.constant 3 : index
    %c10_104 = arith.constant 10 : index
    %292 = memref.load %arg2[%c3_103, %c10_104] : memref<4x30xf32, #tpu.memory_space<smem>>
    %293 = vector.broadcast %292 : f32 to vector<1x128xf32>
    %294 = arith.mulf %291, %293 : vector<1x128xf32>
    %295 = arith.addf %290, %294 : vector<1x128xf32>
    %c10_105 = arith.constant 10 : index
    %296 = memref.load %arg3[%c10_105] : memref<30xf32, #tpu.memory_space<smem>>
    %297 = vector.broadcast %296 : f32 to vector<1x128xf32>
    %298 = arith.addf %295, %297 : vector<1x128xf32>
    %299 = vector.extract_strided_slice %0 {offsets = [0, 0], sizes = [1, 128], strides = [1, 1]} : vector<6x128xf32> to vector<1x128xf32>
    %c0_106 = arith.constant 0 : index
    %c11 = arith.constant 11 : index
    %300 = memref.load %arg2[%c0_106, %c11] : memref<4x30xf32, #tpu.memory_space<smem>>
    %301 = vector.broadcast %300 : f32 to vector<1x128xf32>
    %302 = arith.mulf %299, %301 : vector<1x128xf32>
    %303 = vector.extract_strided_slice %0 {offsets = [1, 0], sizes = [1, 128], strides = [1, 1]} : vector<6x128xf32> to vector<1x128xf32>
    %c1_107 = arith.constant 1 : index
    %c11_108 = arith.constant 11 : index
    %304 = memref.load %arg2[%c1_107, %c11_108] : memref<4x30xf32, #tpu.memory_space<smem>>
    %305 = vector.broadcast %304 : f32 to vector<1x128xf32>
    %306 = arith.mulf %303, %305 : vector<1x128xf32>
    %307 = arith.addf %302, %306 : vector<1x128xf32>
    %308 = vector.extract_strided_slice %0 {offsets = [2, 0], sizes = [1, 128], strides = [1, 1]} : vector<6x128xf32> to vector<1x128xf32>
    %c2_109 = arith.constant 2 : index
    %c11_110 = arith.constant 11 : index
    %309 = memref.load %arg2[%c2_109, %c11_110] : memref<4x30xf32, #tpu.memory_space<smem>>
    %310 = vector.broadcast %309 : f32 to vector<1x128xf32>
    %311 = arith.mulf %308, %310 : vector<1x128xf32>
    %312 = arith.addf %307, %311 : vector<1x128xf32>
    %313 = vector.extract_strided_slice %0 {offsets = [3, 0], sizes = [1, 128], strides = [1, 1]} : vector<6x128xf32> to vector<1x128xf32>
    %c3_111 = arith.constant 3 : index
    %c11_112 = arith.constant 11 : index
    %314 = memref.load %arg2[%c3_111, %c11_112] : memref<4x30xf32, #tpu.memory_space<smem>>
    %315 = vector.broadcast %314 : f32 to vector<1x128xf32>
    %316 = arith.mulf %313, %315 : vector<1x128xf32>
    %317 = arith.addf %312, %316 : vector<1x128xf32>
    %c11_113 = arith.constant 11 : index
    %318 = memref.load %arg3[%c11_113] : memref<30xf32, #tpu.memory_space<smem>>
    %319 = vector.broadcast %318 : f32 to vector<1x128xf32>
    %320 = arith.addf %317, %319 : vector<1x128xf32>
    %321 = vector.extract_strided_slice %0 {offsets = [0, 0], sizes = [1, 128], strides = [1, 1]} : vector<6x128xf32> to vector<1x128xf32>
    %c0_114 = arith.constant 0 : index
    %c12 = arith.constant 12 : index
    %322 = memref.load %arg2[%c0_114, %c12] : memref<4x30xf32, #tpu.memory_space<smem>>
    %323 = vector.broadcast %322 : f32 to vector<1x128xf32>
    %324 = arith.mulf %321, %323 : vector<1x128xf32>
    %325 = vector.extract_strided_slice %0 {offsets = [1, 0], sizes = [1, 128], strides = [1, 1]} : vector<6x128xf32> to vector<1x128xf32>
    %c1_115 = arith.constant 1 : index
    %c12_116 = arith.constant 12 : index
    %326 = memref.load %arg2[%c1_115, %c12_116] : memref<4x30xf32, #tpu.memory_space<smem>>
    %327 = vector.broadcast %326 : f32 to vector<1x128xf32>
    %328 = arith.mulf %325, %327 : vector<1x128xf32>
    %329 = arith.addf %324, %328 : vector<1x128xf32>
    %330 = vector.extract_strided_slice %0 {offsets = [2, 0], sizes = [1, 128], strides = [1, 1]} : vector<6x128xf32> to vector<1x128xf32>
    %c2_117 = arith.constant 2 : index
    %c12_118 = arith.constant 12 : index
    %331 = memref.load %arg2[%c2_117, %c12_118] : memref<4x30xf32, #tpu.memory_space<smem>>
    %332 = vector.broadcast %331 : f32 to vector<1x128xf32>
    %333 = arith.mulf %330, %332 : vector<1x128xf32>
    %334 = arith.addf %329, %333 : vector<1x128xf32>
    %335 = vector.extract_strided_slice %0 {offsets = [3, 0], sizes = [1, 128], strides = [1, 1]} : vector<6x128xf32> to vector<1x128xf32>
    %c3_119 = arith.constant 3 : index
    %c12_120 = arith.constant 12 : index
    %336 = memref.load %arg2[%c3_119, %c12_120] : memref<4x30xf32, #tpu.memory_space<smem>>
    %337 = vector.broadcast %336 : f32 to vector<1x128xf32>
    %338 = arith.mulf %335, %337 : vector<1x128xf32>
    %339 = arith.addf %334, %338 : vector<1x128xf32>
    %c12_121 = arith.constant 12 : index
    %340 = memref.load %arg3[%c12_121] : memref<30xf32, #tpu.memory_space<smem>>
    %341 = vector.broadcast %340 : f32 to vector<1x128xf32>
    %342 = arith.addf %339, %341 : vector<1x128xf32>
    %343 = vector.extract_strided_slice %0 {offsets = [0, 0], sizes = [1, 128], strides = [1, 1]} : vector<6x128xf32> to vector<1x128xf32>
    %c0_122 = arith.constant 0 : index
    %c13 = arith.constant 13 : index
    %344 = memref.load %arg2[%c0_122, %c13] : memref<4x30xf32, #tpu.memory_space<smem>>
    %345 = vector.broadcast %344 : f32 to vector<1x128xf32>
    %346 = arith.mulf %343, %345 : vector<1x128xf32>
    %347 = vector.extract_strided_slice %0 {offsets = [1, 0], sizes = [1, 128], strides = [1, 1]} : vector<6x128xf32> to vector<1x128xf32>
    %c1_123 = arith.constant 1 : index
    %c13_124 = arith.constant 13 : index
    %348 = memref.load %arg2[%c1_123, %c13_124] : memref<4x30xf32, #tpu.memory_space<smem>>
    %349 = vector.broadcast %348 : f32 to vector<1x128xf32>
    %350 = arith.mulf %347, %349 : vector<1x128xf32>
    %351 = arith.addf %346, %350 : vector<1x128xf32>
    %352 = vector.extract_strided_slice %0 {offsets = [2, 0], sizes = [1, 128], strides = [1, 1]} : vector<6x128xf32> to vector<1x128xf32>
    %c2_125 = arith.constant 2 : index
    %c13_126 = arith.constant 13 : index
    %353 = memref.load %arg2[%c2_125, %c13_126] : memref<4x30xf32, #tpu.memory_space<smem>>
    %354 = vector.broadcast %353 : f32 to vector<1x128xf32>
    %355 = arith.mulf %352, %354 : vector<1x128xf32>
    %356 = arith.addf %351, %355 : vector<1x128xf32>
    %357 = vector.extract_strided_slice %0 {offsets = [3, 0], sizes = [1, 128], strides = [1, 1]} : vector<6x128xf32> to vector<1x128xf32>
    %c3_127 = arith.constant 3 : index
    %c13_128 = arith.constant 13 : index
    %358 = memref.load %arg2[%c3_127, %c13_128] : memref<4x30xf32, #tpu.memory_space<smem>>
    %359 = vector.broadcast %358 : f32 to vector<1x128xf32>
    %360 = arith.mulf %357, %359 : vector<1x128xf32>
    %361 = arith.addf %356, %360 : vector<1x128xf32>
    %c13_129 = arith.constant 13 : index
    %362 = memref.load %arg3[%c13_129] : memref<30xf32, #tpu.memory_space<smem>>
    %363 = vector.broadcast %362 : f32 to vector<1x128xf32>
    %364 = arith.addf %361, %363 : vector<1x128xf32>
    %365 = vector.extract_strided_slice %0 {offsets = [0, 0], sizes = [1, 128], strides = [1, 1]} : vector<6x128xf32> to vector<1x128xf32>
    %c0_130 = arith.constant 0 : index
    %c14 = arith.constant 14 : index
    %366 = memref.load %arg2[%c0_130, %c14] : memref<4x30xf32, #tpu.memory_space<smem>>
    %367 = vector.broadcast %366 : f32 to vector<1x128xf32>
    %368 = arith.mulf %365, %367 : vector<1x128xf32>
    %369 = vector.extract_strided_slice %0 {offsets = [1, 0], sizes = [1, 128], strides = [1, 1]} : vector<6x128xf32> to vector<1x128xf32>
    %c1_131 = arith.constant 1 : index
    %c14_132 = arith.constant 14 : index
    %370 = memref.load %arg2[%c1_131, %c14_132] : memref<4x30xf32, #tpu.memory_space<smem>>
    %371 = vector.broadcast %370 : f32 to vector<1x128xf32>
    %372 = arith.mulf %369, %371 : vector<1x128xf32>
    %373 = arith.addf %368, %372 : vector<1x128xf32>
    %374 = vector.extract_strided_slice %0 {offsets = [2, 0], sizes = [1, 128], strides = [1, 1]} : vector<6x128xf32> to vector<1x128xf32>
    %c2_133 = arith.constant 2 : index
    %c14_134 = arith.constant 14 : index
    %375 = memref.load %arg2[%c2_133, %c14_134] : memref<4x30xf32, #tpu.memory_space<smem>>
    %376 = vector.broadcast %375 : f32 to vector<1x128xf32>
    %377 = arith.mulf %374, %376 : vector<1x128xf32>
    %378 = arith.addf %373, %377 : vector<1x128xf32>
    %379 = vector.extract_strided_slice %0 {offsets = [3, 0], sizes = [1, 128], strides = [1, 1]} : vector<6x128xf32> to vector<1x128xf32>
    %c3_135 = arith.constant 3 : index
    %c14_136 = arith.constant 14 : index
    %380 = memref.load %arg2[%c3_135, %c14_136] : memref<4x30xf32, #tpu.memory_space<smem>>
    %381 = vector.broadcast %380 : f32 to vector<1x128xf32>
    %382 = arith.mulf %379, %381 : vector<1x128xf32>
    %383 = arith.addf %378, %382 : vector<1x128xf32>
    %c14_137 = arith.constant 14 : index
    %384 = memref.load %arg3[%c14_137] : memref<30xf32, #tpu.memory_space<smem>>
    %385 = vector.broadcast %384 : f32 to vector<1x128xf32>
    %386 = arith.addf %383, %385 : vector<1x128xf32>
    %387 = arith.negf %298 : vector<1x128xf32>
    %388 = math.exp %387 : vector<1x128xf32>
    %cst_138 = arith.constant 1.000000e+00 : f32
    %389 = vector.broadcast %cst_138 : f32 to vector<1x128xf32>
    %390 = arith.addf %389, %388 : vector<1x128xf32>
    %391 = arith.divf %389, %390 : vector<1x128xf32>
    %392 = arith.negf %342 : vector<1x128xf32>
    %393 = math.exp %392 : vector<1x128xf32>
    %cst_139 = arith.constant 1.000000e+00 : f32
    %394 = vector.broadcast %cst_139 : f32 to vector<1x128xf32>
    %395 = arith.addf %394, %393 : vector<1x128xf32>
    %396 = arith.divf %394, %395 : vector<1x128xf32>
    %397 = arith.addf %1, %396 : vector<1x128xf32>
    %cst_140 = arith.constant 3.200000e+01 : f32
    %398 = vector.broadcast %cst_140 : f32 to vector<1x128xf32>
    %399 = arith.mulf %397, %398 : vector<1x128xf32>
    %400 = arith.negf %320 : vector<1x128xf32>
    %401 = math.exp %400 : vector<1x128xf32>
    %cst_141 = arith.constant 1.000000e+00 : f32
    %402 = vector.broadcast %cst_141 : f32 to vector<1x128xf32>
    %403 = arith.addf %402, %401 : vector<1x128xf32>
    %404 = arith.divf %402, %403 : vector<1x128xf32>
    %405 = arith.addf %2, %404 : vector<1x128xf32>
    %cst_142 = arith.constant 3.200000e+01 : f32
    %406 = vector.broadcast %cst_142 : f32 to vector<1x128xf32>
    %407 = arith.mulf %405, %406 : vector<1x128xf32>
    %c1_143 = arith.constant 1 : index
    %c0_144 = arith.constant 0 : index
    %408 = memref.load %arg4[%c1_143, %c0_144] : memref<3x2xf32, #tpu.memory_space<smem>>
    %409 = math.exp %364 : vector<1x128xf32>
    %410 = vector.broadcast %408 : f32 to vector<1x128xf32>
    %411 = arith.mulf %410, %409 : vector<1x128xf32>
    %c1_145 = arith.constant 1 : index
    %c1_146 = arith.constant 1 : index
    %412 = memref.load %arg4[%c1_145, %c1_146] : memref<3x2xf32, #tpu.memory_space<smem>>
    %413 = math.exp %386 : vector<1x128xf32>
    %414 = vector.broadcast %412 : f32 to vector<1x128xf32>
    %415 = arith.mulf %414, %413 : vector<1x128xf32>
    %cst_147 = arith.constant 5.000000e-01 : f32
    %416 = vector.broadcast %cst_147 : f32 to vector<1x128xf32>
    %417 = arith.mulf %411, %416 : vector<1x128xf32>
    %418 = arith.subf %407, %417 : vector<1x128xf32>
    %cst_148 = arith.constant 5.000000e-01 : f32
    %419 = vector.broadcast %cst_148 : f32 to vector<1x128xf32>
    %420 = arith.mulf %415, %419 : vector<1x128xf32>
    %421 = arith.subf %399, %420 : vector<1x128xf32>
    %422 = arith.addf %418, %411 : vector<1x128xf32>
    %423 = arith.addf %421, %415 : vector<1x128xf32>
    %424 = vector.extract_strided_slice %0 {offsets = [0, 0], sizes = [1, 128], strides = [1, 1]} : vector<6x128xf32> to vector<1x128xf32>
    %c0_149 = arith.constant 0 : index
    %c15 = arith.constant 15 : index
    %425 = memref.load %arg2[%c0_149, %c15] : memref<4x30xf32, #tpu.memory_space<smem>>
    %426 = vector.broadcast %425 : f32 to vector<1x128xf32>
    %427 = arith.mulf %424, %426 : vector<1x128xf32>
    %428 = vector.extract_strided_slice %0 {offsets = [1, 0], sizes = [1, 128], strides = [1, 1]} : vector<6x128xf32> to vector<1x128xf32>
    %c1_150 = arith.constant 1 : index
    %c15_151 = arith.constant 15 : index
    %429 = memref.load %arg2[%c1_150, %c15_151] : memref<4x30xf32, #tpu.memory_space<smem>>
    %430 = vector.broadcast %429 : f32 to vector<1x128xf32>
    %431 = arith.mulf %428, %430 : vector<1x128xf32>
    %432 = arith.addf %427, %431 : vector<1x128xf32>
    %433 = vector.extract_strided_slice %0 {offsets = [2, 0], sizes = [1, 128], strides = [1, 1]} : vector<6x128xf32> to vector<1x128xf32>
    %c2_152 = arith.constant 2 : index
    %c15_153 = arith.constant 15 : index
    %434 = memref.load %arg2[%c2_152, %c15_153] : memref<4x30xf32, #tpu.memory_space<smem>>
    %435 = vector.broadcast %434 : f32 to vector<1x128xf32>
    %436 = arith.mulf %433, %435 : vector<1x128xf32>
    %437 = arith.addf %432, %436 : vector<1x128xf32>
    %438 = vector.extract_strided_slice %0 {offsets = [3, 0], sizes = [1, 128], strides = [1, 1]} : vector<6x128xf32> to vector<1x128xf32>
    %c3_154 = arith.constant 3 : index
    %c15_155 = arith.constant 15 : index
    %439 = memref.load %arg2[%c3_154, %c15_155] : memref<4x30xf32, #tpu.memory_space<smem>>
    %440 = vector.broadcast %439 : f32 to vector<1x128xf32>
    %441 = arith.mulf %438, %440 : vector<1x128xf32>
    %442 = arith.addf %437, %441 : vector<1x128xf32>
    %c15_156 = arith.constant 15 : index
    %443 = memref.load %arg3[%c15_156] : memref<30xf32, #tpu.memory_space<smem>>
    %444 = vector.broadcast %443 : f32 to vector<1x128xf32>
    %445 = arith.addf %442, %444 : vector<1x128xf32>
    %cst_157 = arith.constant 0.000000e+00 : f32
    %446 = vector.broadcast %cst_157 : f32 to vector<1x128xf32>
    %447 = vector.extract_strided_slice %0 {offsets = [0, 0], sizes = [1, 128], strides = [1, 1]} : vector<6x128xf32> to vector<1x128xf32>
    %c0_158 = arith.constant 0 : index
    %c16 = arith.constant 16 : index
    %448 = memref.load %arg2[%c0_158, %c16] : memref<4x30xf32, #tpu.memory_space<smem>>
    %449 = vector.broadcast %448 : f32 to vector<1x128xf32>
    %450 = arith.mulf %447, %449 : vector<1x128xf32>
    %451 = vector.extract_strided_slice %0 {offsets = [1, 0], sizes = [1, 128], strides = [1, 1]} : vector<6x128xf32> to vector<1x128xf32>
    %c1_159 = arith.constant 1 : index
    %c16_160 = arith.constant 16 : index
    %452 = memref.load %arg2[%c1_159, %c16_160] : memref<4x30xf32, #tpu.memory_space<smem>>
    %453 = vector.broadcast %452 : f32 to vector<1x128xf32>
    %454 = arith.mulf %451, %453 : vector<1x128xf32>
    %455 = arith.addf %450, %454 : vector<1x128xf32>
    %456 = vector.extract_strided_slice %0 {offsets = [2, 0], sizes = [1, 128], strides = [1, 1]} : vector<6x128xf32> to vector<1x128xf32>
    %c2_161 = arith.constant 2 : index
    %c16_162 = arith.constant 16 : index
    %457 = memref.load %arg2[%c2_161, %c16_162] : memref<4x30xf32, #tpu.memory_space<smem>>
    %458 = vector.broadcast %457 : f32 to vector<1x128xf32>
    %459 = arith.mulf %456, %458 : vector<1x128xf32>
    %460 = arith.addf %455, %459 : vector<1x128xf32>
    %461 = vector.extract_strided_slice %0 {offsets = [3, 0], sizes = [1, 128], strides = [1, 1]} : vector<6x128xf32> to vector<1x128xf32>
    %c3_163 = arith.constant 3 : index
    %c16_164 = arith.constant 16 : index
    %462 = memref.load %arg2[%c3_163, %c16_164] : memref<4x30xf32, #tpu.memory_space<smem>>
    %463 = vector.broadcast %462 : f32 to vector<1x128xf32>
    %464 = arith.mulf %461, %463 : vector<1x128xf32>
    %465 = arith.addf %460, %464 : vector<1x128xf32>
    %c16_165 = arith.constant 16 : index
    %466 = memref.load %arg3[%c16_165] : memref<30xf32, #tpu.memory_space<smem>>
    %467 = vector.broadcast %466 : f32 to vector<1x128xf32>
    %468 = arith.addf %465, %467 : vector<1x128xf32>
    %469 = arith.cmpf ogt, %468, %445 : vector<1x128xf32>
    %cst_166 = arith.constant 1.000000e+00 : f32
    %470 = vector.broadcast %cst_166 : f32 to vector<1x128xf32>
    %471 = arith.select %469, %470, %446 : vector<1x128xi1>, vector<1x128xf32>
    %472 = arith.select %469, %468, %445 : vector<1x128xi1>, vector<1x128xf32>
    %473 = vector.extract_strided_slice %0 {offsets = [0, 0], sizes = [1, 128], strides = [1, 1]} : vector<6x128xf32> to vector<1x128xf32>
    %c0_167 = arith.constant 0 : index
    %c17 = arith.constant 17 : index
    %474 = memref.load %arg2[%c0_167, %c17] : memref<4x30xf32, #tpu.memory_space<smem>>
    %475 = vector.broadcast %474 : f32 to vector<1x128xf32>
    %476 = arith.mulf %473, %475 : vector<1x128xf32>
    %477 = vector.extract_strided_slice %0 {offsets = [1, 0], sizes = [1, 128], strides = [1, 1]} : vector<6x128xf32> to vector<1x128xf32>
    %c1_168 = arith.constant 1 : index
    %c17_169 = arith.constant 17 : index
    %478 = memref.load %arg2[%c1_168, %c17_169] : memref<4x30xf32, #tpu.memory_space<smem>>
    %479 = vector.broadcast %478 : f32 to vector<1x128xf32>
    %480 = arith.mulf %477, %479 : vector<1x128xf32>
    %481 = arith.addf %476, %480 : vector<1x128xf32>
    %482 = vector.extract_strided_slice %0 {offsets = [2, 0], sizes = [1, 128], strides = [1, 1]} : vector<6x128xf32> to vector<1x128xf32>
    %c2_170 = arith.constant 2 : index
    %c17_171 = arith.constant 17 : index
    %483 = memref.load %arg2[%c2_170, %c17_171] : memref<4x30xf32, #tpu.memory_space<smem>>
    %484 = vector.broadcast %483 : f32 to vector<1x128xf32>
    %485 = arith.mulf %482, %484 : vector<1x128xf32>
    %486 = arith.addf %481, %485 : vector<1x128xf32>
    %487 = vector.extract_strided_slice %0 {offsets = [3, 0], sizes = [1, 128], strides = [1, 1]} : vector<6x128xf32> to vector<1x128xf32>
    %c3_172 = arith.constant 3 : index
    %c17_173 = arith.constant 17 : index
    %488 = memref.load %arg2[%c3_172, %c17_173] : memref<4x30xf32, #tpu.memory_space<smem>>
    %489 = vector.broadcast %488 : f32 to vector<1x128xf32>
    %490 = arith.mulf %487, %489 : vector<1x128xf32>
    %491 = arith.addf %486, %490 : vector<1x128xf32>
    %c17_174 = arith.constant 17 : index
    %492 = memref.load %arg3[%c17_174] : memref<30xf32, #tpu.memory_space<smem>>
    %493 = vector.broadcast %492 : f32 to vector<1x128xf32>
    %494 = arith.addf %491, %493 : vector<1x128xf32>
    %495 = arith.cmpf ogt, %494, %472 : vector<1x128xf32>
    %cst_175 = arith.constant 2.000000e+00 : f32
    %496 = vector.broadcast %cst_175 : f32 to vector<1x128xf32>
    %497 = arith.select %495, %496, %471 : vector<1x128xi1>, vector<1x128xf32>
    %498 = arith.select %495, %494, %472 : vector<1x128xi1>, vector<1x128xf32>
    %499 = vector.extract_strided_slice %0 {offsets = [0, 0], sizes = [1, 128], strides = [1, 1]} : vector<6x128xf32> to vector<1x128xf32>
    %c0_176 = arith.constant 0 : index
    %c18 = arith.constant 18 : index
    %500 = memref.load %arg2[%c0_176, %c18] : memref<4x30xf32, #tpu.memory_space<smem>>
    %501 = vector.broadcast %500 : f32 to vector<1x128xf32>
    %502 = arith.mulf %499, %501 : vector<1x128xf32>
    %503 = vector.extract_strided_slice %0 {offsets = [1, 0], sizes = [1, 128], strides = [1, 1]} : vector<6x128xf32> to vector<1x128xf32>
    %c1_177 = arith.constant 1 : index
    %c18_178 = arith.constant 18 : index
    %504 = memref.load %arg2[%c1_177, %c18_178] : memref<4x30xf32, #tpu.memory_space<smem>>
    %505 = vector.broadcast %504 : f32 to vector<1x128xf32>
    %506 = arith.mulf %503, %505 : vector<1x128xf32>
    %507 = arith.addf %502, %506 : vector<1x128xf32>
    %508 = vector.extract_strided_slice %0 {offsets = [2, 0], sizes = [1, 128], strides = [1, 1]} : vector<6x128xf32> to vector<1x128xf32>
    %c2_179 = arith.constant 2 : index
    %c18_180 = arith.constant 18 : index
    %509 = memref.load %arg2[%c2_179, %c18_180] : memref<4x30xf32, #tpu.memory_space<smem>>
    %510 = vector.broadcast %509 : f32 to vector<1x128xf32>
    %511 = arith.mulf %508, %510 : vector<1x128xf32>
    %512 = arith.addf %507, %511 : vector<1x128xf32>
    %513 = vector.extract_strided_slice %0 {offsets = [3, 0], sizes = [1, 128], strides = [1, 1]} : vector<6x128xf32> to vector<1x128xf32>
    %c3_181 = arith.constant 3 : index
    %c18_182 = arith.constant 18 : index
    %514 = memref.load %arg2[%c3_181, %c18_182] : memref<4x30xf32, #tpu.memory_space<smem>>
    %515 = vector.broadcast %514 : f32 to vector<1x128xf32>
    %516 = arith.mulf %513, %515 : vector<1x128xf32>
    %517 = arith.addf %512, %516 : vector<1x128xf32>
    %c18_183 = arith.constant 18 : index
    %518 = memref.load %arg3[%c18_183] : memref<30xf32, #tpu.memory_space<smem>>
    %519 = vector.broadcast %518 : f32 to vector<1x128xf32>
    %520 = arith.addf %517, %519 : vector<1x128xf32>
    %521 = arith.cmpf ogt, %520, %498 : vector<1x128xf32>
    %cst_184 = arith.constant 3.000000e+00 : f32
    %522 = vector.broadcast %cst_184 : f32 to vector<1x128xf32>
    %523 = arith.select %521, %522, %497 : vector<1x128xi1>, vector<1x128xf32>
    %524 = arith.select %521, %520, %498 : vector<1x128xi1>, vector<1x128xf32>
    %525 = vector.extract_strided_slice %0 {offsets = [0, 0], sizes = [1, 128], strides = [1, 1]} : vector<6x128xf32> to vector<1x128xf32>
    %c0_185 = arith.constant 0 : index
    %c19 = arith.constant 19 : index
    %526 = memref.load %arg2[%c0_185, %c19] : memref<4x30xf32, #tpu.memory_space<smem>>
    %527 = vector.broadcast %526 : f32 to vector<1x128xf32>
    %528 = arith.mulf %525, %527 : vector<1x128xf32>
    %529 = vector.extract_strided_slice %0 {offsets = [1, 0], sizes = [1, 128], strides = [1, 1]} : vector<6x128xf32> to vector<1x128xf32>
    %c1_186 = arith.constant 1 : index
    %c19_187 = arith.constant 19 : index
    %530 = memref.load %arg2[%c1_186, %c19_187] : memref<4x30xf32, #tpu.memory_space<smem>>
    %531 = vector.broadcast %530 : f32 to vector<1x128xf32>
    %532 = arith.mulf %529, %531 : vector<1x128xf32>
    %533 = arith.addf %528, %532 : vector<1x128xf32>
    %534 = vector.extract_strided_slice %0 {offsets = [2, 0], sizes = [1, 128], strides = [1, 1]} : vector<6x128xf32> to vector<1x128xf32>
    %c2_188 = arith.constant 2 : index
    %c19_189 = arith.constant 19 : index
    %535 = memref.load %arg2[%c2_188, %c19_189] : memref<4x30xf32, #tpu.memory_space<smem>>
    %536 = vector.broadcast %535 : f32 to vector<1x128xf32>
    %537 = arith.mulf %534, %536 : vector<1x128xf32>
    %538 = arith.addf %533, %537 : vector<1x128xf32>
    %539 = vector.extract_strided_slice %0 {offsets = [3, 0], sizes = [1, 128], strides = [1, 1]} : vector<6x128xf32> to vector<1x128xf32>
    %c3_190 = arith.constant 3 : index
    %c19_191 = arith.constant 19 : index
    %540 = memref.load %arg2[%c3_190, %c19_191] : memref<4x30xf32, #tpu.memory_space<smem>>
    %541 = vector.broadcast %540 : f32 to vector<1x128xf32>
    %542 = arith.mulf %539, %541 : vector<1x128xf32>
    %543 = arith.addf %538, %542 : vector<1x128xf32>
    %c19_192 = arith.constant 19 : index
    %544 = memref.load %arg3[%c19_192] : memref<30xf32, #tpu.memory_space<smem>>
    %545 = vector.broadcast %544 : f32 to vector<1x128xf32>
    %546 = arith.addf %543, %545 : vector<1x128xf32>
    %547 = arith.cmpf ogt, %546, %524 : vector<1x128xf32>
    %cst_193 = arith.constant 4.000000e+00 : f32
    %548 = vector.broadcast %cst_193 : f32 to vector<1x128xf32>
    %549 = arith.select %547, %548, %523 : vector<1x128xi1>, vector<1x128xf32>
    %cst_194 = arith.constant 0.000000e+00 : f32
    %550 = vector.broadcast %cst_194 : f32 to vector<1x128xf32>
    %551 = vector.extract_strided_slice %0 {offsets = [0, 0], sizes = [1, 128], strides = [1, 1]} : vector<6x128xf32> to vector<1x128xf32>
    %c0_195 = arith.constant 0 : index
    %c20 = arith.constant 20 : index
    %552 = memref.load %arg2[%c0_195, %c20] : memref<4x30xf32, #tpu.memory_space<smem>>
    %553 = vector.broadcast %552 : f32 to vector<1x128xf32>
    %554 = arith.mulf %551, %553 : vector<1x128xf32>
    %555 = vector.extract_strided_slice %0 {offsets = [1, 0], sizes = [1, 128], strides = [1, 1]} : vector<6x128xf32> to vector<1x128xf32>
    %c1_196 = arith.constant 1 : index
    %c20_197 = arith.constant 20 : index
    %556 = memref.load %arg2[%c1_196, %c20_197] : memref<4x30xf32, #tpu.memory_space<smem>>
    %557 = vector.broadcast %556 : f32 to vector<1x128xf32>
    %558 = arith.mulf %555, %557 : vector<1x128xf32>
    %559 = arith.addf %554, %558 : vector<1x128xf32>
    %560 = vector.extract_strided_slice %0 {offsets = [2, 0], sizes = [1, 128], strides = [1, 1]} : vector<6x128xf32> to vector<1x128xf32>
    %c2_198 = arith.constant 2 : index
    %c20_199 = arith.constant 20 : index
    %561 = memref.load %arg2[%c2_198, %c20_199] : memref<4x30xf32, #tpu.memory_space<smem>>
    %562 = vector.broadcast %561 : f32 to vector<1x128xf32>
    %563 = arith.mulf %560, %562 : vector<1x128xf32>
    %564 = arith.addf %559, %563 : vector<1x128xf32>
    %565 = vector.extract_strided_slice %0 {offsets = [3, 0], sizes = [1, 128], strides = [1, 1]} : vector<6x128xf32> to vector<1x128xf32>
    %c3_200 = arith.constant 3 : index
    %c20_201 = arith.constant 20 : index
    %566 = memref.load %arg2[%c3_200, %c20_201] : memref<4x30xf32, #tpu.memory_space<smem>>
    %567 = vector.broadcast %566 : f32 to vector<1x128xf32>
    %568 = arith.mulf %565, %567 : vector<1x128xf32>
    %569 = arith.addf %564, %568 : vector<1x128xf32>
    %c20_202 = arith.constant 20 : index
    %570 = memref.load %arg3[%c20_202] : memref<30xf32, #tpu.memory_space<smem>>
    %571 = vector.broadcast %570 : f32 to vector<1x128xf32>
    %572 = arith.addf %569, %571 : vector<1x128xf32>
    %573 = vector.extract_strided_slice %0 {offsets = [0, 0], sizes = [1, 128], strides = [1, 1]} : vector<6x128xf32> to vector<1x128xf32>
    %c0_203 = arith.constant 0 : index
    %c21 = arith.constant 21 : index
    %574 = memref.load %arg2[%c0_203, %c21] : memref<4x30xf32, #tpu.memory_space<smem>>
    %575 = vector.broadcast %574 : f32 to vector<1x128xf32>
    %576 = arith.mulf %573, %575 : vector<1x128xf32>
    %577 = vector.extract_strided_slice %0 {offsets = [1, 0], sizes = [1, 128], strides = [1, 1]} : vector<6x128xf32> to vector<1x128xf32>
    %c1_204 = arith.constant 1 : index
    %c21_205 = arith.constant 21 : index
    %578 = memref.load %arg2[%c1_204, %c21_205] : memref<4x30xf32, #tpu.memory_space<smem>>
    %579 = vector.broadcast %578 : f32 to vector<1x128xf32>
    %580 = arith.mulf %577, %579 : vector<1x128xf32>
    %581 = arith.addf %576, %580 : vector<1x128xf32>
    %582 = vector.extract_strided_slice %0 {offsets = [2, 0], sizes = [1, 128], strides = [1, 1]} : vector<6x128xf32> to vector<1x128xf32>
    %c2_206 = arith.constant 2 : index
    %c21_207 = arith.constant 21 : index
    %583 = memref.load %arg2[%c2_206, %c21_207] : memref<4x30xf32, #tpu.memory_space<smem>>
    %584 = vector.broadcast %583 : f32 to vector<1x128xf32>
    %585 = arith.mulf %582, %584 : vector<1x128xf32>
    %586 = arith.addf %581, %585 : vector<1x128xf32>
    %587 = vector.extract_strided_slice %0 {offsets = [3, 0], sizes = [1, 128], strides = [1, 1]} : vector<6x128xf32> to vector<1x128xf32>
    %c3_208 = arith.constant 3 : index
    %c21_209 = arith.constant 21 : index
    %588 = memref.load %arg2[%c3_208, %c21_209] : memref<4x30xf32, #tpu.memory_space<smem>>
    %589 = vector.broadcast %588 : f32 to vector<1x128xf32>
    %590 = arith.mulf %587, %589 : vector<1x128xf32>
    %591 = arith.addf %586, %590 : vector<1x128xf32>
    %c21_210 = arith.constant 21 : index
    %592 = memref.load %arg3[%c21_210] : memref<30xf32, #tpu.memory_space<smem>>
    %593 = vector.broadcast %592 : f32 to vector<1x128xf32>
    %594 = arith.addf %591, %593 : vector<1x128xf32>
    %595 = vector.extract_strided_slice %0 {offsets = [0, 0], sizes = [1, 128], strides = [1, 1]} : vector<6x128xf32> to vector<1x128xf32>
    %c0_211 = arith.constant 0 : index
    %c22 = arith.constant 22 : index
    %596 = memref.load %arg2[%c0_211, %c22] : memref<4x30xf32, #tpu.memory_space<smem>>
    %597 = vector.broadcast %596 : f32 to vector<1x128xf32>
    %598 = arith.mulf %595, %597 : vector<1x128xf32>
    %599 = vector.extract_strided_slice %0 {offsets = [1, 0], sizes = [1, 128], strides = [1, 1]} : vector<6x128xf32> to vector<1x128xf32>
    %c1_212 = arith.constant 1 : index
    %c22_213 = arith.constant 22 : index
    %600 = memref.load %arg2[%c1_212, %c22_213] : memref<4x30xf32, #tpu.memory_space<smem>>
    %601 = vector.broadcast %600 : f32 to vector<1x128xf32>
    %602 = arith.mulf %599, %601 : vector<1x128xf32>
    %603 = arith.addf %598, %602 : vector<1x128xf32>
    %604 = vector.extract_strided_slice %0 {offsets = [2, 0], sizes = [1, 128], strides = [1, 1]} : vector<6x128xf32> to vector<1x128xf32>
    %c2_214 = arith.constant 2 : index
    %c22_215 = arith.constant 22 : index
    %605 = memref.load %arg2[%c2_214, %c22_215] : memref<4x30xf32, #tpu.memory_space<smem>>
    %606 = vector.broadcast %605 : f32 to vector<1x128xf32>
    %607 = arith.mulf %604, %606 : vector<1x128xf32>
    %608 = arith.addf %603, %607 : vector<1x128xf32>
    %609 = vector.extract_strided_slice %0 {offsets = [3, 0], sizes = [1, 128], strides = [1, 1]} : vector<6x128xf32> to vector<1x128xf32>
    %c3_216 = arith.constant 3 : index
    %c22_217 = arith.constant 22 : index
    %610 = memref.load %arg2[%c3_216, %c22_217] : memref<4x30xf32, #tpu.memory_space<smem>>
    %611 = vector.broadcast %610 : f32 to vector<1x128xf32>
    %612 = arith.mulf %609, %611 : vector<1x128xf32>
    %613 = arith.addf %608, %612 : vector<1x128xf32>
    %c22_218 = arith.constant 22 : index
    %614 = memref.load %arg3[%c22_218] : memref<30xf32, #tpu.memory_space<smem>>
    %615 = vector.broadcast %614 : f32 to vector<1x128xf32>
    %616 = arith.addf %613, %615 : vector<1x128xf32>
    %617 = vector.extract_strided_slice %0 {offsets = [0, 0], sizes = [1, 128], strides = [1, 1]} : vector<6x128xf32> to vector<1x128xf32>
    %c0_219 = arith.constant 0 : index
    %c23 = arith.constant 23 : index
    %618 = memref.load %arg2[%c0_219, %c23] : memref<4x30xf32, #tpu.memory_space<smem>>
    %619 = vector.broadcast %618 : f32 to vector<1x128xf32>
    %620 = arith.mulf %617, %619 : vector<1x128xf32>
    %621 = vector.extract_strided_slice %0 {offsets = [1, 0], sizes = [1, 128], strides = [1, 1]} : vector<6x128xf32> to vector<1x128xf32>
    %c1_220 = arith.constant 1 : index
    %c23_221 = arith.constant 23 : index
    %622 = memref.load %arg2[%c1_220, %c23_221] : memref<4x30xf32, #tpu.memory_space<smem>>
    %623 = vector.broadcast %622 : f32 to vector<1x128xf32>
    %624 = arith.mulf %621, %623 : vector<1x128xf32>
    %625 = arith.addf %620, %624 : vector<1x128xf32>
    %626 = vector.extract_strided_slice %0 {offsets = [2, 0], sizes = [1, 128], strides = [1, 1]} : vector<6x128xf32> to vector<1x128xf32>
    %c2_222 = arith.constant 2 : index
    %c23_223 = arith.constant 23 : index
    %627 = memref.load %arg2[%c2_222, %c23_223] : memref<4x30xf32, #tpu.memory_space<smem>>
    %628 = vector.broadcast %627 : f32 to vector<1x128xf32>
    %629 = arith.mulf %626, %628 : vector<1x128xf32>
    %630 = arith.addf %625, %629 : vector<1x128xf32>
    %631 = vector.extract_strided_slice %0 {offsets = [3, 0], sizes = [1, 128], strides = [1, 1]} : vector<6x128xf32> to vector<1x128xf32>
    %c3_224 = arith.constant 3 : index
    %c23_225 = arith.constant 23 : index
    %632 = memref.load %arg2[%c3_224, %c23_225] : memref<4x30xf32, #tpu.memory_space<smem>>
    %633 = vector.broadcast %632 : f32 to vector<1x128xf32>
    %634 = arith.mulf %631, %633 : vector<1x128xf32>
    %635 = arith.addf %630, %634 : vector<1x128xf32>
    %c23_226 = arith.constant 23 : index
    %636 = memref.load %arg3[%c23_226] : memref<30xf32, #tpu.memory_space<smem>>
    %637 = vector.broadcast %636 : f32 to vector<1x128xf32>
    %638 = arith.addf %635, %637 : vector<1x128xf32>
    %639 = vector.extract_strided_slice %0 {offsets = [0, 0], sizes = [1, 128], strides = [1, 1]} : vector<6x128xf32> to vector<1x128xf32>
    %c0_227 = arith.constant 0 : index
    %c24 = arith.constant 24 : index
    %640 = memref.load %arg2[%c0_227, %c24] : memref<4x30xf32, #tpu.memory_space<smem>>
    %641 = vector.broadcast %640 : f32 to vector<1x128xf32>
    %642 = arith.mulf %639, %641 : vector<1x128xf32>
    %643 = vector.extract_strided_slice %0 {offsets = [1, 0], sizes = [1, 128], strides = [1, 1]} : vector<6x128xf32> to vector<1x128xf32>
    %c1_228 = arith.constant 1 : index
    %c24_229 = arith.constant 24 : index
    %644 = memref.load %arg2[%c1_228, %c24_229] : memref<4x30xf32, #tpu.memory_space<smem>>
    %645 = vector.broadcast %644 : f32 to vector<1x128xf32>
    %646 = arith.mulf %643, %645 : vector<1x128xf32>
    %647 = arith.addf %642, %646 : vector<1x128xf32>
    %648 = vector.extract_strided_slice %0 {offsets = [2, 0], sizes = [1, 128], strides = [1, 1]} : vector<6x128xf32> to vector<1x128xf32>
    %c2_230 = arith.constant 2 : index
    %c24_231 = arith.constant 24 : index
    %649 = memref.load %arg2[%c2_230, %c24_231] : memref<4x30xf32, #tpu.memory_space<smem>>
    %650 = vector.broadcast %649 : f32 to vector<1x128xf32>
    %651 = arith.mulf %648, %650 : vector<1x128xf32>
    %652 = arith.addf %647, %651 : vector<1x128xf32>
    %653 = vector.extract_strided_slice %0 {offsets = [3, 0], sizes = [1, 128], strides = [1, 1]} : vector<6x128xf32> to vector<1x128xf32>
    %c3_232 = arith.constant 3 : index
    %c24_233 = arith.constant 24 : index
    %654 = memref.load %arg2[%c3_232, %c24_233] : memref<4x30xf32, #tpu.memory_space<smem>>
    %655 = vector.broadcast %654 : f32 to vector<1x128xf32>
    %656 = arith.mulf %653, %655 : vector<1x128xf32>
    %657 = arith.addf %652, %656 : vector<1x128xf32>
    %c24_234 = arith.constant 24 : index
    %658 = memref.load %arg3[%c24_234] : memref<30xf32, #tpu.memory_space<smem>>
    %659 = vector.broadcast %658 : f32 to vector<1x128xf32>
    %660 = arith.addf %657, %659 : vector<1x128xf32>
    %661 = arith.negf %572 : vector<1x128xf32>
    %662 = math.exp %661 : vector<1x128xf32>
    %cst_235 = arith.constant 1.000000e+00 : f32
    %663 = vector.broadcast %cst_235 : f32 to vector<1x128xf32>
    %664 = arith.addf %663, %662 : vector<1x128xf32>
    %665 = arith.divf %663, %664 : vector<1x128xf32>
    %666 = arith.negf %616 : vector<1x128xf32>
    %667 = math.exp %666 : vector<1x128xf32>
    %cst_236 = arith.constant 1.000000e+00 : f32
    %668 = vector.broadcast %cst_236 : f32 to vector<1x128xf32>
    %669 = arith.addf %668, %667 : vector<1x128xf32>
    %670 = arith.divf %668, %669 : vector<1x128xf32>
    %671 = arith.addf %1, %670 : vector<1x128xf32>
    %cst_237 = arith.constant 3.200000e+01 : f32
    %672 = vector.broadcast %cst_237 : f32 to vector<1x128xf32>
    %673 = arith.mulf %671, %672 : vector<1x128xf32>
    %674 = arith.negf %594 : vector<1x128xf32>
    %675 = math.exp %674 : vector<1x128xf32>
    %cst_238 = arith.constant 1.000000e+00 : f32
    %676 = vector.broadcast %cst_238 : f32 to vector<1x128xf32>
    %677 = arith.addf %676, %675 : vector<1x128xf32>
    %678 = arith.divf %676, %677 : vector<1x128xf32>
    %679 = arith.addf %2, %678 : vector<1x128xf32>
    %cst_239 = arith.constant 3.200000e+01 : f32
    %680 = vector.broadcast %cst_239 : f32 to vector<1x128xf32>
    %681 = arith.mulf %679, %680 : vector<1x128xf32>
    %c2_240 = arith.constant 2 : index
    %c0_241 = arith.constant 0 : index
    %682 = memref.load %arg4[%c2_240, %c0_241] : memref<3x2xf32, #tpu.memory_space<smem>>
    %683 = math.exp %638 : vector<1x128xf32>
    %684 = vector.broadcast %682 : f32 to vector<1x128xf32>
    %685 = arith.mulf %684, %683 : vector<1x128xf32>
    %c2_242 = arith.constant 2 : index
    %c1_243 = arith.constant 1 : index
    %686 = memref.load %arg4[%c2_242, %c1_243] : memref<3x2xf32, #tpu.memory_space<smem>>
    %687 = math.exp %660 : vector<1x128xf32>
    %688 = vector.broadcast %686 : f32 to vector<1x128xf32>
    %689 = arith.mulf %688, %687 : vector<1x128xf32>
    %cst_244 = arith.constant 5.000000e-01 : f32
    %690 = vector.broadcast %cst_244 : f32 to vector<1x128xf32>
    %691 = arith.mulf %685, %690 : vector<1x128xf32>
    %692 = arith.subf %681, %691 : vector<1x128xf32>
    %cst_245 = arith.constant 5.000000e-01 : f32
    %693 = vector.broadcast %cst_245 : f32 to vector<1x128xf32>
    %694 = arith.mulf %689, %693 : vector<1x128xf32>
    %695 = arith.subf %673, %694 : vector<1x128xf32>
    %696 = arith.addf %692, %685 : vector<1x128xf32>
    %697 = arith.addf %695, %689 : vector<1x128xf32>
    %698 = vector.extract_strided_slice %0 {offsets = [0, 0], sizes = [1, 128], strides = [1, 1]} : vector<6x128xf32> to vector<1x128xf32>
    %c0_246 = arith.constant 0 : index
    %c25 = arith.constant 25 : index
    %699 = memref.load %arg2[%c0_246, %c25] : memref<4x30xf32, #tpu.memory_space<smem>>
    %700 = vector.broadcast %699 : f32 to vector<1x128xf32>
    %701 = arith.mulf %698, %700 : vector<1x128xf32>
    %702 = vector.extract_strided_slice %0 {offsets = [1, 0], sizes = [1, 128], strides = [1, 1]} : vector<6x128xf32> to vector<1x128xf32>
    %c1_247 = arith.constant 1 : index
    %c25_248 = arith.constant 25 : index
    %703 = memref.load %arg2[%c1_247, %c25_248] : memref<4x30xf32, #tpu.memory_space<smem>>
    %704 = vector.broadcast %703 : f32 to vector<1x128xf32>
    %705 = arith.mulf %702, %704 : vector<1x128xf32>
    %706 = arith.addf %701, %705 : vector<1x128xf32>
    %707 = vector.extract_strided_slice %0 {offsets = [2, 0], sizes = [1, 128], strides = [1, 1]} : vector<6x128xf32> to vector<1x128xf32>
    %c2_249 = arith.constant 2 : index
    %c25_250 = arith.constant 25 : index
    %708 = memref.load %arg2[%c2_249, %c25_250] : memref<4x30xf32, #tpu.memory_space<smem>>
    %709 = vector.broadcast %708 : f32 to vector<1x128xf32>
    %710 = arith.mulf %707, %709 : vector<1x128xf32>
    %711 = arith.addf %706, %710 : vector<1x128xf32>
    %712 = vector.extract_strided_slice %0 {offsets = [3, 0], sizes = [1, 128], strides = [1, 1]} : vector<6x128xf32> to vector<1x128xf32>
    %c3_251 = arith.constant 3 : index
    %c25_252 = arith.constant 25 : index
    %713 = memref.load %arg2[%c3_251, %c25_252] : memref<4x30xf32, #tpu.memory_space<smem>>
    %714 = vector.broadcast %713 : f32 to vector<1x128xf32>
    %715 = arith.mulf %712, %714 : vector<1x128xf32>
    %716 = arith.addf %711, %715 : vector<1x128xf32>
    %c25_253 = arith.constant 25 : index
    %717 = memref.load %arg3[%c25_253] : memref<30xf32, #tpu.memory_space<smem>>
    %718 = vector.broadcast %717 : f32 to vector<1x128xf32>
    %719 = arith.addf %716, %718 : vector<1x128xf32>
    %cst_254 = arith.constant 0.000000e+00 : f32
    %720 = vector.broadcast %cst_254 : f32 to vector<1x128xf32>
    %721 = vector.extract_strided_slice %0 {offsets = [0, 0], sizes = [1, 128], strides = [1, 1]} : vector<6x128xf32> to vector<1x128xf32>
    %c0_255 = arith.constant 0 : index
    %c26 = arith.constant 26 : index
    %722 = memref.load %arg2[%c0_255, %c26] : memref<4x30xf32, #tpu.memory_space<smem>>
    %723 = vector.broadcast %722 : f32 to vector<1x128xf32>
    %724 = arith.mulf %721, %723 : vector<1x128xf32>
    %725 = vector.extract_strided_slice %0 {offsets = [1, 0], sizes = [1, 128], strides = [1, 1]} : vector<6x128xf32> to vector<1x128xf32>
    %c1_256 = arith.constant 1 : index
    %c26_257 = arith.constant 26 : index
    %726 = memref.load %arg2[%c1_256, %c26_257] : memref<4x30xf32, #tpu.memory_space<smem>>
    %727 = vector.broadcast %726 : f32 to vector<1x128xf32>
    %728 = arith.mulf %725, %727 : vector<1x128xf32>
    %729 = arith.addf %724, %728 : vector<1x128xf32>
    %730 = vector.extract_strided_slice %0 {offsets = [2, 0], sizes = [1, 128], strides = [1, 1]} : vector<6x128xf32> to vector<1x128xf32>
    %c2_258 = arith.constant 2 : index
    %c26_259 = arith.constant 26 : index
    %731 = memref.load %arg2[%c2_258, %c26_259] : memref<4x30xf32, #tpu.memory_space<smem>>
    %732 = vector.broadcast %731 : f32 to vector<1x128xf32>
    %733 = arith.mulf %730, %732 : vector<1x128xf32>
    %734 = arith.addf %729, %733 : vector<1x128xf32>
    %735 = vector.extract_strided_slice %0 {offsets = [3, 0], sizes = [1, 128], strides = [1, 1]} : vector<6x128xf32> to vector<1x128xf32>
    %c3_260 = arith.constant 3 : index
    %c26_261 = arith.constant 26 : index
    %736 = memref.load %arg2[%c3_260, %c26_261] : memref<4x30xf32, #tpu.memory_space<smem>>
    %737 = vector.broadcast %736 : f32 to vector<1x128xf32>
    %738 = arith.mulf %735, %737 : vector<1x128xf32>
    %739 = arith.addf %734, %738 : vector<1x128xf32>
    %c26_262 = arith.constant 26 : index
    %740 = memref.load %arg3[%c26_262] : memref<30xf32, #tpu.memory_space<smem>>
    %741 = vector.broadcast %740 : f32 to vector<1x128xf32>
    %742 = arith.addf %739, %741 : vector<1x128xf32>
    %743 = arith.cmpf ogt, %742, %719 : vector<1x128xf32>
    %cst_263 = arith.constant 1.000000e+00 : f32
    %744 = vector.broadcast %cst_263 : f32 to vector<1x128xf32>
    %745 = arith.select %743, %744, %720 : vector<1x128xi1>, vector<1x128xf32>
    %746 = arith.select %743, %742, %719 : vector<1x128xi1>, vector<1x128xf32>
    %747 = vector.extract_strided_slice %0 {offsets = [0, 0], sizes = [1, 128], strides = [1, 1]} : vector<6x128xf32> to vector<1x128xf32>
    %c0_264 = arith.constant 0 : index
    %c27 = arith.constant 27 : index
    %748 = memref.load %arg2[%c0_264, %c27] : memref<4x30xf32, #tpu.memory_space<smem>>
    %749 = vector.broadcast %748 : f32 to vector<1x128xf32>
    %750 = arith.mulf %747, %749 : vector<1x128xf32>
    %751 = vector.extract_strided_slice %0 {offsets = [1, 0], sizes = [1, 128], strides = [1, 1]} : vector<6x128xf32> to vector<1x128xf32>
    %c1_265 = arith.constant 1 : index
    %c27_266 = arith.constant 27 : index
    %752 = memref.load %arg2[%c1_265, %c27_266] : memref<4x30xf32, #tpu.memory_space<smem>>
    %753 = vector.broadcast %752 : f32 to vector<1x128xf32>
    %754 = arith.mulf %751, %753 : vector<1x128xf32>
    %755 = arith.addf %750, %754 : vector<1x128xf32>
    %756 = vector.extract_strided_slice %0 {offsets = [2, 0], sizes = [1, 128], strides = [1, 1]} : vector<6x128xf32> to vector<1x128xf32>
    %c2_267 = arith.constant 2 : index
    %c27_268 = arith.constant 27 : index
    %757 = memref.load %arg2[%c2_267, %c27_268] : memref<4x30xf32, #tpu.memory_space<smem>>
    %758 = vector.broadcast %757 : f32 to vector<1x128xf32>
    %759 = arith.mulf %756, %758 : vector<1x128xf32>
    %760 = arith.addf %755, %759 : vector<1x128xf32>
    %761 = vector.extract_strided_slice %0 {offsets = [3, 0], sizes = [1, 128], strides = [1, 1]} : vector<6x128xf32> to vector<1x128xf32>
    %c3_269 = arith.constant 3 : index
    %c27_270 = arith.constant 27 : index
    %762 = memref.load %arg2[%c3_269, %c27_270] : memref<4x30xf32, #tpu.memory_space<smem>>
    %763 = vector.broadcast %762 : f32 to vector<1x128xf32>
    %764 = arith.mulf %761, %763 : vector<1x128xf32>
    %765 = arith.addf %760, %764 : vector<1x128xf32>
    %c27_271 = arith.constant 27 : index
    %766 = memref.load %arg3[%c27_271] : memref<30xf32, #tpu.memory_space<smem>>
    %767 = vector.broadcast %766 : f32 to vector<1x128xf32>
    %768 = arith.addf %765, %767 : vector<1x128xf32>
    %769 = arith.cmpf ogt, %768, %746 : vector<1x128xf32>
    %cst_272 = arith.constant 2.000000e+00 : f32
    %770 = vector.broadcast %cst_272 : f32 to vector<1x128xf32>
    %771 = arith.select %769, %770, %745 : vector<1x128xi1>, vector<1x128xf32>
    %772 = arith.select %769, %768, %746 : vector<1x128xi1>, vector<1x128xf32>
    %773 = vector.extract_strided_slice %0 {offsets = [0, 0], sizes = [1, 128], strides = [1, 1]} : vector<6x128xf32> to vector<1x128xf32>
    %c0_273 = arith.constant 0 : index
    %c28 = arith.constant 28 : index
    %774 = memref.load %arg2[%c0_273, %c28] : memref<4x30xf32, #tpu.memory_space<smem>>
    %775 = vector.broadcast %774 : f32 to vector<1x128xf32>
    %776 = arith.mulf %773, %775 : vector<1x128xf32>
    %777 = vector.extract_strided_slice %0 {offsets = [1, 0], sizes = [1, 128], strides = [1, 1]} : vector<6x128xf32> to vector<1x128xf32>
    %c1_274 = arith.constant 1 : index
    %c28_275 = arith.constant 28 : index
    %778 = memref.load %arg2[%c1_274, %c28_275] : memref<4x30xf32, #tpu.memory_space<smem>>
    %779 = vector.broadcast %778 : f32 to vector<1x128xf32>
    %780 = arith.mulf %777, %779 : vector<1x128xf32>
    %781 = arith.addf %776, %780 : vector<1x128xf32>
    %782 = vector.extract_strided_slice %0 {offsets = [2, 0], sizes = [1, 128], strides = [1, 1]} : vector<6x128xf32> to vector<1x128xf32>
    %c2_276 = arith.constant 2 : index
    %c28_277 = arith.constant 28 : index
    %783 = memref.load %arg2[%c2_276, %c28_277] : memref<4x30xf32, #tpu.memory_space<smem>>
    %784 = vector.broadcast %783 : f32 to vector<1x128xf32>
    %785 = arith.mulf %782, %784 : vector<1x128xf32>
    %786 = arith.addf %781, %785 : vector<1x128xf32>
    %787 = vector.extract_strided_slice %0 {offsets = [3, 0], sizes = [1, 128], strides = [1, 1]} : vector<6x128xf32> to vector<1x128xf32>
    %c3_278 = arith.constant 3 : index
    %c28_279 = arith.constant 28 : index
    %788 = memref.load %arg2[%c3_278, %c28_279] : memref<4x30xf32, #tpu.memory_space<smem>>
    %789 = vector.broadcast %788 : f32 to vector<1x128xf32>
    %790 = arith.mulf %787, %789 : vector<1x128xf32>
    %791 = arith.addf %786, %790 : vector<1x128xf32>
    %c28_280 = arith.constant 28 : index
    %792 = memref.load %arg3[%c28_280] : memref<30xf32, #tpu.memory_space<smem>>
    %793 = vector.broadcast %792 : f32 to vector<1x128xf32>
    %794 = arith.addf %791, %793 : vector<1x128xf32>
    %795 = arith.cmpf ogt, %794, %772 : vector<1x128xf32>
    %cst_281 = arith.constant 3.000000e+00 : f32
    %796 = vector.broadcast %cst_281 : f32 to vector<1x128xf32>
    %797 = arith.select %795, %796, %771 : vector<1x128xi1>, vector<1x128xf32>
    %798 = arith.select %795, %794, %772 : vector<1x128xi1>, vector<1x128xf32>
    %799 = vector.extract_strided_slice %0 {offsets = [0, 0], sizes = [1, 128], strides = [1, 1]} : vector<6x128xf32> to vector<1x128xf32>
    %c0_282 = arith.constant 0 : index
    %c29 = arith.constant 29 : index
    %800 = memref.load %arg2[%c0_282, %c29] : memref<4x30xf32, #tpu.memory_space<smem>>
    %801 = vector.broadcast %800 : f32 to vector<1x128xf32>
    %802 = arith.mulf %799, %801 : vector<1x128xf32>
    %803 = vector.extract_strided_slice %0 {offsets = [1, 0], sizes = [1, 128], strides = [1, 1]} : vector<6x128xf32> to vector<1x128xf32>
    %c1_283 = arith.constant 1 : index
    %c29_284 = arith.constant 29 : index
    %804 = memref.load %arg2[%c1_283, %c29_284] : memref<4x30xf32, #tpu.memory_space<smem>>
    %805 = vector.broadcast %804 : f32 to vector<1x128xf32>
    %806 = arith.mulf %803, %805 : vector<1x128xf32>
    %807 = arith.addf %802, %806 : vector<1x128xf32>
    %808 = vector.extract_strided_slice %0 {offsets = [2, 0], sizes = [1, 128], strides = [1, 1]} : vector<6x128xf32> to vector<1x128xf32>
    %c2_285 = arith.constant 2 : index
    %c29_286 = arith.constant 29 : index
    %809 = memref.load %arg2[%c2_285, %c29_286] : memref<4x30xf32, #tpu.memory_space<smem>>
    %810 = vector.broadcast %809 : f32 to vector<1x128xf32>
    %811 = arith.mulf %808, %810 : vector<1x128xf32>
    %812 = arith.addf %807, %811 : vector<1x128xf32>
    %813 = vector.extract_strided_slice %0 {offsets = [3, 0], sizes = [1, 128], strides = [1, 1]} : vector<6x128xf32> to vector<1x128xf32>
    %c3_287 = arith.constant 3 : index
    %c29_288 = arith.constant 29 : index
    %814 = memref.load %arg2[%c3_287, %c29_288] : memref<4x30xf32, #tpu.memory_space<smem>>
    %815 = vector.broadcast %814 : f32 to vector<1x128xf32>
    %816 = arith.mulf %813, %815 : vector<1x128xf32>
    %817 = arith.addf %812, %816 : vector<1x128xf32>
    %c29_289 = arith.constant 29 : index
    %818 = memref.load %arg3[%c29_289] : memref<30xf32, #tpu.memory_space<smem>>
    %819 = vector.broadcast %818 : f32 to vector<1x128xf32>
    %820 = arith.addf %817, %819 : vector<1x128xf32>
    %821 = arith.cmpf ogt, %820, %798 : vector<1x128xf32>
    %cst_290 = arith.constant 4.000000e+00 : f32
    %822 = vector.broadcast %cst_290 : f32 to vector<1x128xf32>
    %823 = arith.select %821, %822, %797 : vector<1x128xi1>, vector<1x128xf32>
    %cst_291 = arith.constant 0.000000e+00 : f32
    %824 = vector.broadcast %cst_291 : f32 to vector<1x128xf32>
    %825 = tpu.concatenate %117, %144, %147, %148, %149, %275, %24, %276, %391, %418, %421, %422, %423, %549, %298, %550 in 0 : vector<1x128xf32>, vector<1x128xf32>, vector<1x128xf32>, vector<1x128xf32>, vector<1x128xf32>, vector<1x128xf32>, vector<1x128xf32>, vector<1x128xf32>, vector<1x128xf32>, vector<1x128xf32>, vector<1x128xf32>, vector<1x128xf32>, vector<1x128xf32>, vector<1x128xf32>, vector<1x128xf32>, vector<1x128xf32> -> vector<16x128xf32>
    %826 = tpu.concatenate %665, %692, %695, %696, %697, %823, %572, %824 in 0 : vector<1x128xf32>, vector<1x128xf32>, vector<1x128xf32>, vector<1x128xf32>, vector<1x128xf32>, vector<1x128xf32>, vector<1x128xf32>, vector<1x128xf32> -> vector<8x128xf32>
    %827 = tpu.concatenate %825, %826 in 0 : vector<16x128xf32>, vector<8x128xf32> -> vector<24x128xf32>
    %c0_292 = arith.constant 0 : index
    %c0_293 = arith.constant 0 : index
    %828 = vector.load %arg5[%c0_292, %c0_293] : memref<24x128xf32, #tpu.memory_space<vmem>>, vector<24x128xf32>
    tpu.vector_store %arg5[%c0_292, %c0_293], %827 {strides = array<i32>} : memref<24x128xf32, #tpu.memory_space<vmem>>, vector<24x128xf32>,
    return
  }
  func.func @transform_0(%arg0: i32) -> (i32, i32) {
    %c0_i32 = arith.constant 0 : i32
    %c0_i32_0 = arith.constant 0 : i32
    return %c0_i32, %arg0 : i32, i32
  }
  func.func @transform_1(%arg0: i32) -> (i32, i32) {
    %c0_i32 = arith.constant 0 : i32
    %c0_i32_0 = arith.constant 0 : i32
    %c0_i32_1 = arith.constant 0 : i32
    return %c0_i32, %c0_i32_0 : i32, i32
  }
  func.func @transform_2(%arg0: i32) -> i32 {
    %c0_i32 = arith.constant 0 : i32
    %c0_i32_0 = arith.constant 0 : i32
    return %c0_i32 : i32
  }
  func.func @transform_3(%arg0: i32) -> (i32, i32) {
    %c0_i32 = arith.constant 0 : i32
    %c0_i32_0 = arith.constant 0 : i32
    %c0_i32_1 = arith.constant 0 : i32
    return %c0_i32, %c0_i32_0 : i32, i32
  }
  func.func @transform_4(%arg0: i32) -> (i32, i32) {
    %c0_i32 = arith.constant 0 : i32
    %c0_i32_0 = arith.constant 0 : i32
    return %c0_i32, %arg0 : i32, i32
  }
}

</mosaic_0001>

<llo_original>
// kernel: tpu_custom_call.1
$region0: #{tpu_custom_call.1}
  #allocation0 [shape = 'u32[]', space=smem, size = 0x4, offset = 0x4, fixed_abs, tag = 'smem constant byte address 0x4 - core index']
  #allocation1 [shape = 'u32[144,128]{1,0:T(1,128)}', space=vmem, size = 0x12000, scoped, tag = 'internal scratch']
  %s0 = inlined_call_operand.hbm [shape: f32[6,128], index: 0, kind: input, shape index: {}]
  %s1 = inlined_call_operand.vmem [shape: f32[4,30], index: 1, kind: input, shape index: {}]
  %s2 = inlined_call_operand.vmem [shape: f32[30], index: 2, kind: input, shape index: {}]
  %s3 = inlined_call_operand.vmem [shape: f32[3,2], index: 3, kind: input, shape index: {}]
  %s4 = inlined_call_operand.hbm [shape: f32[24,128], index: 4, kind: output, shape index: {}]
  %s5 = sld [smem:[#allocation0]]
  $region42: #{tpu_custom_call.1} parent=0
    _
  %s7 = ssub.s32 1, %s5
  %s8 = scalar_select 0, %s7, %s5
  $region1: #{tpu_custom_call.1} parent=0
    #allocation2 [shape = 'u8[4096]{0}', space=vmem, size = 0x1000, scoped, tag = 'input window, operand 0, single buffered']
    #allocation3 [shape = 's32[1]{0}', space=sflag, size = 0x4, scoped, tag = 'scoped memory for tpu_custom_call.1']
    #allocation4 [shape = 's32[1]{0}', space=sflag, size = 0x4, scoped, tag = 'scoped memory for tpu_custom_call.1']
    #allocation5 [shape = 's32[1]{0}', space=sflag, size = 0x4, scoped, tag = 'scoped memory for tpu_custom_call.1']
    #allocation6 [shape = 'u8[2048]{0}', space=smem, size = 0x800, scoped, tag = 'input window, operand 1, single buffered']
    #allocation7 [shape = 'u8[512]{0}', space=smem, size = 0x200, scoped, tag = 'input window, operand 2, single buffered']
    #allocation8 [shape = 's32[1]{0}', space=sflag, size = 0x4, scoped, tag = 'scoped memory for tpu_custom_call.1']
    #allocation9 [shape = 'u8[2048]{0}', space=smem, size = 0x800, scoped, tag = 'input window, operand 3, single buffered']
    #allocation10 [shape = 'u8[12288]{0}', space=vmem, size = 0x3000, scoped, tag = 'output window, operand 0, single buffered']
    %9 = vsyncpa [#allocation3], 0
    %10 = vsyncpa [#allocation5], 0
    %11 = vsyncpa [#allocation8], 0
    %12 = vsyncpa [#allocation4], 0
    // Predicated region
    $region2: #{tpu_custom_call.1} parent=1 // pred_check
      _
    $region3: #{tpu_custom_call.1} parent=1 // pred_check_branch
      %14 = sbr.rel (0) target = $region5
    $region4: #{tpu_custom_call.1} parent=1 // pred_region
      %s16 = ssub.s32 128, 128
      %17 = vsyncadd [#allocation3], %s16
      %s19 = sshll.u32 [#allocation2], 4
      %s20 = int_to_ptr.vmem [resolvable:$true] %s19
      %22 = dma.hbm_to_vmem [thread:$0]  %s0, 128, %s20, [#allocation3]
    $region5: #{tpu_custom_call.1} parent=1 // pred_fallthru
      _
    // Predicated region
    $region6: #{tpu_custom_call.1} parent=1 // pred_check
      _
    $region7: #{tpu_custom_call.1} parent=1 // pred_check_branch
      %24 = sbr.rel (0) target = $region9
    $region8: #{tpu_custom_call.1} parent=1 // pred_region
      %s26 = ssub.s32 64, 64
      %27 = vsyncadd [#allocation5], %s26
      %s29 = sshll.u32 %s1, 4
      %s30 = int_to_ptr.vmem [resolvable:$true] %s29
      %32 = dma.vmem_to_smem %s30, 64, [#allocation6], [#allocation5]
    $region9: #{tpu_custom_call.1} parent=1 // pred_fallthru
      _
    // Predicated region
    $region10: #{tpu_custom_call.1} parent=1 // pred_check
      _
    $region11: #{tpu_custom_call.1} parent=1 // pred_check_branch
      %34 = sbr.rel (0) target = $region13
    $region12: #{tpu_custom_call.1} parent=1 // pred_region
      %s36 = ssub.s32 16, 16
      %37 = vsyncadd [#allocation8], %s36
      %s39 = sshll.u32 %s2, 4
      %s40 = int_to_ptr.vmem [resolvable:$true] %s39
      %42 = dma.vmem_to_smem %s40, 16, [#allocation7], [#allocation8]
    $region13: #{tpu_custom_call.1} parent=1 // pred_fallthru
      _
    // Predicated region
    $region14: #{tpu_custom_call.1} parent=1 // pred_check
      _
    $region15: #{tpu_custom_call.1} parent=1 // pred_check_branch
      %44 = sbr.rel (0) target = $region17
    $region16: #{tpu_custom_call.1} parent=1 // pred_region
      %s46 = ssub.s32 64, 64
      %47 = vsyncadd [#allocation8], %s46
      %s49 = sshll.u32 %s3, 4
      %s50 = int_to_ptr.vmem [resolvable:$true] %s49
      %52 = dma.vmem_to_smem %s50, 64, [#allocation9], [#allocation8]
    $region17: #{tpu_custom_call.1} parent=1 // pred_fallthru
      _
    // Predicated region
    $region18: #{tpu_custom_call.1} parent=1 // pred_check
      _
    $region19: #{tpu_custom_call.1} parent=1 // pred_check_branch
      %54 = sbr.rel (0) target = $region21
    $region20: #{tpu_custom_call.1} parent=1 // pred_region
      %55 = dma.done [#allocation3], 128
    $region21: #{tpu_custom_call.1} parent=1 // pred_fallthru
      _
    // Predicated region
    $region22: #{tpu_custom_call.1} parent=1 // pred_check
      _
    $region23: #{tpu_custom_call.1} parent=1 // pred_check_branch
      %57 = sbr.rel (0) target = $region25
    $region24: #{tpu_custom_call.1} parent=1 // pred_region
      %58 = dma.done [#allocation5], 64
    $region25: #{tpu_custom_call.1} parent=1 // pred_fallthru
      _
    // Predicated region
    $region26: #{tpu_custom_call.1} parent=1 // pred_check
      _
    $region27: #{tpu_custom_call.1} parent=1 // pred_check_branch
      %60 = sbr.rel (0) target = $region29
    $region28: #{tpu_custom_call.1} parent=1 // pred_region
      %61 = dma.done [#allocation8], 16
    $region29: #{tpu_custom_call.1} parent=1 // pred_fallthru
      _
    // Predicated region
    $region30: #{tpu_custom_call.1} parent=1 // pred_check
      _
    $region31: #{tpu_custom_call.1} parent=1 // pred_check_branch
      %63 = sbr.rel (0) target = $region33
    $region32: #{tpu_custom_call.1} parent=1 // pred_region
      %64 = dma.done [#allocation8], 64
    $region33: #{tpu_custom_call.1} parent=1 // pred_fallthru
      _
    %65 = sfence
    %v66 = vld [vmem:[#allocation2] sm:$0x3f]
    %s67 = sld [smem:[#allocation6]]
    %v68 = vstv %s67
    %v69 = vmul.f32 %v66, %v68
    %s70 = sld [smem:[#allocation6 + $0x80]]
    %v71 = vstv %s70
    %v72 = vmul.f32 %v66, %v71
    %v74 = vrot.slane %v72, 1
    %v76 = vadd.f32 %v69, %v74
    %s77 = sld [smem:[#allocation6 + $0x100]]
    %v78 = vstv %s77
    %v79 = vmul.f32 %v66, %v78
    %v81 = vrot.slane %v79, 2
    %v83 = vadd.f32 %v76, %v81
    %s84 = sld [smem:[#allocation6 + $0x180]]
    %v85 = vstv %s84
    %v86 = vmul.f32 %v66, %v85
    %v88 = vrot.slane %v86, 3
    %v90 = vadd.f32 %v83, %v88
    %s91 = sld [smem:[#allocation7]]
    %v92 = vstv %s91
    %v93 = vadd.f32 %v90, %v92
    %s94 = sld [smem:[#allocation6 + $0x1]]
    %v95 = vstv %s94
    %v96 = vmul.f32 %v66, %v95
    %s97 = sld [smem:[#allocation6 + $0x81]]
    %v98 = vstv %s97
    %v99 = vmul.f32 %v66, %v98
    %v101 = vrot.slane %v99, 1
    %v103 = vadd.f32 %v96, %v101
    %s104 = sld [smem:[#allocation6 + $0x101]]
    %v105 = vstv %s104
    %v106 = vmul.f32 %v66, %v105
    %v108 = vrot.slane %v106, 2
    %v110 = vadd.f32 %v103, %v108
    %s111 = sld [smem:[#allocation6 + $0x181]]
    %v112 = vstv %s111
    %v113 = vmul.f32 %v66, %v112
    %v115 = vrot.slane %v113, 3
    %v117 = vadd.f32 %v110, %v115
    %s118 = sld [smem:[#allocation7 + $0x1]]
    %v119 = vstv %s118
    %v120 = vadd.f32 %v117, %v119
    %s121 = sld [smem:[#allocation6 + $0x2]]
    %v122 = vstv %s121
    %v123 = vmul.f32 %v66, %v122
    %s124 = sld [smem:[#allocation6 + $0x82]]
    %v125 = vstv %s124
    %v126 = vmul.f32 %v66, %v125
    %v128 = vrot.slane %v126, 1
    %v130 = vadd.f32 %v123, %v128
    %s131 = sld [smem:[#allocation6 + $0x102]]
    %v132 = vstv %s131
    %v133 = vmul.f32 %v66, %v132
    %v135 = vrot.slane %v133, 2
    %v137 = vadd.f32 %v130, %v135
    %s138 = sld [smem:[#allocation6 + $0x182]]
    %v139 = vstv %s138
    %v140 = vmul.f32 %v66, %v139
    %v142 = vrot.slane %v140, 3
    %v144 = vadd.f32 %v137, %v142
    %s145 = sld [smem:[#allocation7 + $0x2]]
    %v146 = vstv %s145
    %v147 = vadd.f32 %v144, %v146
    %s148 = sld [smem:[#allocation6 + $0x3]]
    %v149 = vstv %s148
    %v150 = vmul.f32 %v66, %v149
    %s151 = sld [smem:[#allocation6 + $0x83]]
    %v152 = vstv %s151
    %v153 = vmul.f32 %v66, %v152
    %v155 = vrot.slane %v153, 1
    %v157 = vadd.f32 %v150, %v155
    %s158 = sld [smem:[#allocation6 + $0x103]]
    %v159 = vstv %s158
    %v160 = vmul.f32 %v66, %v159
    %v162 = vrot.slane %v160, 2
    %v164 = vadd.f32 %v157, %v162
    %s165 = sld [smem:[#allocation6 + $0x183]]
    %v166 = vstv %s165
    %v167 = vmul.f32 %v66, %v166
    %v169 = vrot.slane %v167, 3
    %v171 = vadd.f32 %v164, %v169
    %s172 = sld [smem:[#allocation7 + $0x3]]
    %v173 = vstv %s172
    %v174 = vadd.f32 %v171, %v173
    %s175 = sld [smem:[#allocation6 + $0x4]]
    %v176 = vstv %s175
    %v177 = vmul.f32 %v66, %v176
    %s178 = sld [smem:[#allocation6 + $0x84]]
    %v179 = vstv %s178
    %v180 = vmul.f32 %v66, %v179
    %v182 = vrot.slane %v180, 1
    %v184 = vadd.f32 %v177, %v182
    %s185 = sld [smem:[#allocation6 + $0x104]]
    %v186 = vstv %s185
    %v187 = vmul.f32 %v66, %v186
    %v189 = vrot.slane %v187, 2
    %v191 = vadd.f32 %v184, %v189
    %s192 = sld [smem:[#allocation6 + $0x184]]
    %v193 = vstv %s192
    %v194 = vmul.f32 %v66, %v193
    %v196 = vrot.slane %v194, 3
    %v198 = vadd.f32 %v191, %v196
    %s199 = sld [smem:[#allocation7 + $0x4]]
    %v200 = vstv %s199
    %v201 = vadd.f32 %v198, %v200
    %v202 = vxor.u32 %v93, 2147483648
    %v203 = vmul.f32 %v202, 1.442695
    %v204 = vpow.pop %v203
    %v205 = vadd.f32 %v204, 1.0
    %v206 = vrcp.pop %v205
    %v207 = vmul.f32 1.0, %v206
    %v208 = vxor.u32 %v147, 2147483648
    %v209 = vmul.f32 %v208, 1.442695
    %v210 = vpow.pop %v209
    %v211 = vadd.f32 %v210, 1.0
    %v212 = vrcp.pop %v211
    %v213 = vmul.f32 1.0, %v212
    %v215 = vrot.slane %v213, 4
    %v217 = vadd.f32 %v66, %v215
    %v218 = vmul.f32 %v217, 32.0
    %v219 = vxor.u32 %v120, 2147483648
    %v220 = vmul.f32 %v219, 1.442695
    %v221 = vpow.pop %v220
    %v222 = vadd.f32 %v221, 1.0
    %v223 = vrcp.pop %v222
    %v224 = vmul.f32 1.0, %v223
    %v226 = vrot.slane %v224, 3
    %v228 = vadd.f32 %v66, %v226
    %v229 = vmul.f32 %v228, 32.0
    %s230 = sld [smem:[#allocation9]]
    %v231 = vmul.f32 %v174, 1.442695
    %v232 = vpow.pop %v231
    %v233 = vstv %s230
    %v234 = vmul.f32 %v233, %v232
    %s235 = sld [smem:[#allocation9 + $0x1]]
    %v236 = vmul.f32 %v201, 1.442695
    %v237 = vpow.pop %v236
    %v238 = vstv %s235
    %v239 = vmul.f32 %v238, %v237
    %v240 = vmul.f32 %v234, 0.5
    %v242 = vrot.slane %v240, 3
    %v244 = vsub.f32 %v229, %v242
    %v245 = vmul.f32 %v239, 0.5
    %v247 = vrot.slane %v245, 4
    %v249 = vsub.f32 %v218, %v247
    %v251 = vrot.slane %v234, 3
    %v253 = vadd.f32 %v244, %v251
    %v255 = vrot.slane %v239, 4
    %v257 = vadd.f32 %v249, %v255
    %s258 = sld [smem:[#allocation6 + $0x5]]
    %v259 = vstv %s258
    %v260 = vmul.f32 %v66, %v259
    %s261 = sld [smem:[#allocation6 + $0x85]]
    %v262 = vstv %s261
    %v263 = vmul.f32 %v66, %v262
    %v265 = vrot.slane %v263, 1
    %v267 = vadd.f32 %v260, %v265
    %s268 = sld [smem:[#allocation6 + $0x105]]
    %v269 = vstv %s268
    %v270 = vmul.f32 %v66, %v269
    %v272 = vrot.slane %v270, 2
    %v274 = vadd.f32 %v267, %v272
    %s275 = sld [smem:[#allocation6 + $0x185]]
    %v276 = vstv %s275
    %v277 = vmul.f32 %v66, %v276
    %v279 = vrot.slane %v277, 3
    %v281 = vadd.f32 %v274, %v279
    %s282 = sld [smem:[#allocation7 + $0x5]]
    %v283 = vstv %s282
    %v284 = vadd.f32 %v281, %v283
    %s285 = sld [smem:[#allocation6 + $0x6]]
    %v286 = vstv %s285
    %v287 = vmul.f32 %v66, %v286
    %s288 = sld [smem:[#allocation6 + $0x86]]
    %v289 = vstv %s288
    %v290 = vmul.f32 %v66, %v289
    %v292 = vrot.slane %v290, 1
    %v294 = vadd.f32 %v287, %v292
    %s295 = sld [smem:[#allocation6 + $0x106]]
    %v296 = vstv %s295
    %v297 = vmul.f32 %v66, %v296
    %v299 = vrot.slane %v297, 2
    %v301 = vadd.f32 %v294, %v299
    %s302 = sld [smem:[#allocation6 + $0x186]]
    %v303 = vstv %s302
    %v304 = vmul.f32 %v66, %v303
    %v306 = vrot.slane %v304, 3
    %v308 = vadd.f32 %v301, %v306
    %s309 = sld [smem:[#allocation7 + $0x6]]
    %v310 = vstv %s309
    %v311 = vadd.f32 %v308, %v310
    %vm312 = vcmp.gt.f32.partialorder %v311, %v284
    %v313 = vsel %vm312, 1.0, 0.0
    %v314 = vsel %vm312, %v311, %v284
    %s315 = sld [smem:[#allocation6 + $0x7]]
    %v316 = vstv %s315
    %v317 = vmul.f32 %v66, %v316
    %s318 = sld [smem:[#allocation6 + $0x87]]
    %v319 = vstv %s318
    %v320 = vmul.f32 %v66, %v319
    %v322 = vrot.slane %v320, 1
    %v324 = vadd.f32 %v317, %v322
    %s325 = sld [smem:[#allocation6 + $0x107]]
    %v326 = vstv %s325
    %v327 = vmul.f32 %v66, %v326
    %v329 = vrot.slane %v327, 2
    %v331 = vadd.f32 %v324, %v329
    %s332 = sld [smem:[#allocation6 + $0x187]]
    %v333 = vstv %s332
    %v334 = vmul.f32 %v66, %v333
    %v336 = vrot.slane %v334, 3
    %v338 = vadd.f32 %v331, %v336
    %s339 = sld [smem:[#allocation7 + $0x7]]
    %v340 = vstv %s339
    %v341 = vadd.f32 %v338, %v340
    %vm342 = vcmp.gt.f32.partialorder %v341, %v314
    %v343 = vsel %vm342, 2.0, %v313
    %v344 = vsel %vm342, %v341, %v314
    %s345 = sld [smem:[#allocation6 + $0x8]]
    %v346 = vstv %s345
    %v347 = vmul.f32 %v66, %v346
    %s348 = sld [smem:[#allocation6 + $0x88]]
    %v349 = vstv %s348
    %v350 = vmul.f32 %v66, %v349
    %v352 = vrot.slane %v350, 1
    %v354 = vadd.f32 %v347, %v352
    %s355 = sld [smem:[#allocation6 + $0x108]]
    %v356 = vstv %s355
    %v357 = vmul.f32 %v66, %v356
    %v359 = vrot.slane %v357, 2
    %v361 = vadd.f32 %v354, %v359
    %s362 = sld [smem:[#allocation6 + $0x188]]
    %v363 = vstv %s362
    %v364 = vmul.f32 %v66, %v363
    %v366 = vrot.slane %v364, 3
    %v368 = vadd.f32 %v361, %v366
    %s369 = sld [smem:[#allocation7 + $0x8]]
    %v370 = vstv %s369
    %v371 = vadd.f32 %v368, %v370
    %vm372 = vcmp.gt.f32.partialorder %v371, %v344
    %v373 = vsel %vm372, 3.0, %v343
    %v374 = vsel %vm372, %v371, %v344
    %s375 = sld [smem:[#allocation6 + $0x9]]
    %v376 = vstv %s375
    %v377 = vmul.f32 %v66, %v376
    %s378 = sld [smem:[#allocation6 + $0x89]]
    %v379 = vstv %s378
    %v380 = vmul.f32 %v66, %v379
    %v382 = vrot.slane %v380, 1
    %v384 = vadd.f32 %v377, %v382
    %s385 = sld [smem:[#allocation6 + $0x109]]
    %v386 = vstv %s385
    %v387 = vmul.f32 %v66, %v386
    %v389 = vrot.slane %v387, 2
    %v391 = vadd.f32 %v384, %v389
    %s392 = sld [smem:[#allocation6 + $0x189]]
    %v393 = vstv %s392
    %v394 = vmul.f32 %v66, %v393
    %v396 = vrot.slane %v394, 3
    %v398 = vadd.f32 %v391, %v396
    %s399 = sld [smem:[#allocation7 + $0x9]]
    %v400 = vstv %s399
    %v401 = vadd.f32 %v398, %v400
    %vm402 = vcmp.gt.f32.partialorder %v401, %v374
    %v403 = vsel %vm402, 4.0, %v373
    %s404 = sld [smem:[#allocation6 + $0xa]]
    %v405 = vstv %s404
    %v406 = vmul.f32 %v66, %v405
    %s407 = sld [smem:[#allocation6 + $0x8a]]
    %v408 = vstv %s407
    %v409 = vmul.f32 %v66, %v408
    %v411 = vrot.slane %v409, 1
    %v413 = vadd.f32 %v406, %v411
    %s414 = sld [smem:[#allocation6 + $0x10a]]
    %v415 = vstv %s414
    %v416 = vmul.f32 %v66, %v415
    %v418 = vrot.slane %v416, 2
    %v420 = vadd.f32 %v413, %v418
    %s421 = sld [smem:[#allocation6 + $0x18a]]
    %v422 = vstv %s421
    %v423 = vmul.f32 %v66, %v422
    %v425 = vrot.slane %v423, 3
    %v427 = vadd.f32 %v420, %v425
    %s428 = sld [smem:[#allocation7 + $0xa]]
    %v429 = vstv %s428
    %v430 = vadd.f32 %v427, %v429
    %s431 = sld [smem:[#allocation6 + $0xb]]
    %v432 = vstv %s431
    %v433 = vmul.f32 %v66, %v432
    %s434 = sld [smem:[#allocation6 + $0x8b]]
    %v435 = vstv %s434
    %v436 = vmul.f32 %v66, %v435
    %v438 = vrot.slane %v436, 1
    %v440 = vadd.f32 %v433, %v438
    %s441 = sld [smem:[#allocation6 + $0x10b]]
    %v442 = vstv %s441
    %v443 = vmul.f32 %v66, %v442
    %v445 = vrot.slane %v443, 2
    %v447 = vadd.f32 %v440, %v445
    %s448 = sld [smem:[#allocation6 + $0x18b]]
    %v449 = vstv %s448
    %v450 = vmul.f32 %v66, %v449
    %v452 = vrot.slane %v450, 3
    %v454 = vadd.f32 %v447, %v452
    %s455 = sld [smem:[#allocation7 + $0xb]]
    %v456 = vstv %s455
    %v457 = vadd.f32 %v454, %v456
    %s458 = sld [smem:[#allocation6 + $0xc]]
    %v459 = vstv %s458
    %v460 = vmul.f32 %v66, %v459
    %s461 = sld [smem:[#allocation6 + $0x8c]]
    %v462 = vstv %s461
    %v463 = vmul.f32 %v66, %v462
    %v465 = vrot.slane %v463, 1
    %v467 = vadd.f32 %v460, %v465
    %s468 = sld [smem:[#allocation6 + $0x10c]]
    %v469 = vstv %s468
    %v470 = vmul.f32 %v66, %v469
    %v472 = vrot.slane %v470, 2
    %v474 = vadd.f32 %v467, %v472
    %s475 = sld [smem:[#allocation6 + $0x18c]]
    %v476 = vstv %s475
    %v477 = vmul.f32 %v66, %v476
    %v479 = vrot.slane %v477, 3
    %v481 = vadd.f32 %v474, %v479
    %s482 = sld [smem:[#allocation7 + $0xc]]
    %v483 = vstv %s482
    %v484 = vadd.f32 %v481, %v483
    %s485 = sld [smem:[#allocation6 + $0xd]]
    %v486 = vstv %s485
    %v487 = vmul.f32 %v66, %v486
    %s488 = sld [smem:[#allocation6 + $0x8d]]
    %v489 = vstv %s488
    %v490 = vmul.f32 %v66, %v489
    %v492 = vrot.slane %v490, 1
    %v494 = vadd.f32 %v487, %v492
    %s495 = sld [smem:[#allocation6 + $0x10d]]
    %v496 = vstv %s495
    %v497 = vmul.f32 %v66, %v496
    %v499 = vrot.slane %v497, 2
    %v501 = vadd.f32 %v494, %v499
    %s502 = sld [smem:[#allocation6 + $0x18d]]
    %v503 = vstv %s502
    %v504 = vmul.f32 %v66, %v503
    %v506 = vrot.slane %v504, 3
    %v508 = vadd.f32 %v501, %v506
    %s509 = sld [smem:[#allocation7 + $0xd]]
    %v510 = vstv %s509
    %v511 = vadd.f32 %v508, %v510
    %s512 = sld [smem:[#allocation6 + $0xe]]
    %v513 = vstv %s512
    %v514 = vmul.f32 %v66, %v513
    %s515 = sld [smem:[#allocation6 + $0x8e]]
    %v516 = vstv %s515
    %v517 = vmul.f32 %v66, %v516
    %v519 = vrot.slane %v517, 1
    %v521 = vadd.f32 %v514, %v519
    %s522 = sld [smem:[#allocation6 + $0x10e]]
    %v523 = vstv %s522
    %v524 = vmul.f32 %v66, %v523
    %v526 = vrot.slane %v524, 2
    %v528 = vadd.f32 %v521, %v526
    %s529 = sld [smem:[#allocation6 + $0x18e]]
    %v530 = vstv %s529
    %v531 = vmul.f32 %v66, %v530
    %v533 = vrot.slane %v531, 3
    %v535 = vadd.f32 %v528, %v533
    %s536 = sld [smem:[#allocation7 + $0xe]]
    %v537 = vstv %s536
    %v538 = vadd.f32 %v535, %v537
    %v539 = vxor.u32 %v430, 2147483648
    %v540 = vmul.f32 %v539, 1.442695
    %v541 = vpow.pop %v540
    %v542 = vadd.f32 %v541, 1.0
    %v543 = vrcp.pop %v542
    %v544 = vmul.f32 1.0, %v543
    %v545 = vxor.u32 %v484, 2147483648
    %v546 = vmul.f32 %v545, 1.442695
    %v547 = vpow.pop %v546
    %v548 = vadd.f32 %v547, 1.0
    %v549 = vrcp.pop %v548
    %v550 = vmul.f32 1.0, %v549
    %v552 = vrot.slane %v550, 4
    %v554 = vadd.f32 %v66, %v552
    %v555 = vmul.f32 %v554, 32.0
    %v556 = vxor.u32 %v457, 2147483648
    %v557 = vmul.f32 %v556, 1.442695
    %v558 = vpow.pop %v557
    %v559 = vadd.f32 %v558, 1.0
    %v560 = vrcp.pop %v559
    %v561 = vmul.f32 1.0, %v560
    %v563 = vrot.slane %v561, 3
    %v565 = vadd.f32 %v66, %v563
    %v566 = vmul.f32 %v565, 32.0
    %s567 = sld [smem:[#allocation9 + $0x80]]
    %v568 = vmul.f32 %v511, 1.442695
    %v569 = vpow.pop %v568
    %v570 = vstv %s567
    %v571 = vmul.f32 %v570, %v569
    %s572 = sld [smem:[#allocation9 + $0x81]]
    %v573 = vmul.f32 %v538, 1.442695
    %v574 = vpow.pop %v573
    %v575 = vstv %s572
    %v576 = vmul.f32 %v575, %v574
    %v577 = vmul.f32 %v571, 0.5
    %v579 = vrot.slane %v577, 3
    %v581 = vsub.f32 %v566, %v579
    %v582 = vmul.f32 %v576, 0.5
    %v584 = vrot.slane %v582, 4
    %v586 = vsub.f32 %v555, %v584
    %v588 = vrot.slane %v571, 3
    %v590 = vadd.f32 %v581, %v588
    %v592 = vrot.slane %v576, 4
    %v594 = vadd.f32 %v586, %v592
    %s595 = sld [smem:[#allocation6 + $0xf]]
    %v596 = vstv %s595
    %v597 = vmul.f32 %v66, %v596
    %s598 = sld [smem:[#allocation6 + $0x8f]]
    %v599 = vstv %s598
    %v600 = vmul.f32 %v66, %v599
    %v602 = vrot.slane %v600, 1
    %v604 = vadd.f32 %v597, %v602
    %s605 = sld [smem:[#allocation6 + $0x10f]]
    %v606 = vstv %s605
    %v607 = vmul.f32 %v66, %v606
    %v609 = vrot.slane %v607, 2
    %v611 = vadd.f32 %v604, %v609
    %s612 = sld [smem:[#allocation6 + $0x18f]]
    %v613 = vstv %s612
    %v614 = vmul.f32 %v66, %v613
    %v616 = vrot.slane %v614, 3
    %v618 = vadd.f32 %v611, %v616
    %s619 = sld [smem:[#allocation7 + $0xf]]
    %v620 = vstv %s619
    %v621 = vadd.f32 %v618, %v620
    %s622 = sld [smem:[#allocation6 + $0x10]]
    %v623 = vstv %s622
    %v624 = vmul.f32 %v66, %v623
    %s625 = sld [smem:[#allocation6 + $0x90]]
    %v626 = vstv %s625
    %v627 = vmul.f32 %v66, %v626
    %v629 = vrot.slane %v627, 1
    %v631 = vadd.f32 %v624, %v629
    %s632 = sld [smem:[#allocation6 + $0x110]]
    %v633 = vstv %s632
    %v634 = vmul.f32 %v66, %v633
    %v636 = vrot.slane %v634, 2
    %v638 = vadd.f32 %v631, %v636
    %s639 = sld [smem:[#allocation6 + $0x190]]
    %v640 = vstv %s639
    %v641 = vmul.f32 %v66, %v640
    %v643 = vrot.slane %v641, 3
    %v645 = vadd.f32 %v638, %v643
    %s646 = sld [smem:[#allocation7 + $0x10]]
    %v647 = vstv %s646
    %v648 = vadd.f32 %v645, %v647
    %vm649 = vcmp.gt.f32.partialorder %v648, %v621
    %v650 = vsel %vm649, 1.0, 0.0
    %v651 = vsel %vm649, %v648, %v621
    %s652 = sld [smem:[#allocation6 + $0x11]]
    %v653 = vstv %s652
    %v654 = vmul.f32 %v66, %v653
    %s655 = sld [smem:[#allocation6 + $0x91]]
    %v656 = vstv %s655
    %v657 = vmul.f32 %v66, %v656
    %v659 = vrot.slane %v657, 1
    %v661 = vadd.f32 %v654, %v659
    %s662 = sld [smem:[#allocation6 + $0x111]]
    %v663 = vstv %s662
    %v664 = vmul.f32 %v66, %v663
    %v666 = vrot.slane %v664, 2
    %v668 = vadd.f32 %v661, %v666
    %s669 = sld [smem:[#allocation6 + $0x191]]
    %v670 = vstv %s669
    %v671 = vmul.f32 %v66, %v670
    %v673 = vrot.slane %v671, 3
    %v675 = vadd.f32 %v668, %v673
    %s676 = sld [smem:[#allocation7 + $0x11]]
    %v677 = vstv %s676
    %v678 = vadd.f32 %v675, %v677
    %vm679 = vcmp.gt.f32.partialorder %v678, %v651
    %v680 = vsel %vm679, 2.0, %v650
    %v681 = vsel %vm679, %v678, %v651
    %s682 = sld [smem:[#allocation6 + $0x12]]
    %v683 = vstv %s682
    %v684 = vmul.f32 %v66, %v683
    %s685 = sld [smem:[#allocation6 + $0x92]]
    %v686 = vstv %s685
    %v687 = vmul.f32 %v66, %v686
    %v689 = vrot.slane %v687, 1
    %v691 = vadd.f32 %v684, %v689
    %s692 = sld [smem:[#allocation6 + $0x112]]
    %v693 = vstv %s692
    %v694 = vmul.f32 %v66, %v693
    %v696 = vrot.slane %v694, 2
    %v698 = vadd.f32 %v691, %v696
    %s699 = sld [smem:[#allocation6 + $0x192]]
    %v700 = vstv %s699
    %v701 = vmul.f32 %v66, %v700
    %v703 = vrot.slane %v701, 3
    %v705 = vadd.f32 %v698, %v703
    %s706 = sld [smem:[#allocation7 + $0x12]]
    %v707 = vstv %s706
    %v708 = vadd.f32 %v705, %v707
    %vm709 = vcmp.gt.f32.partialorder %v708, %v681
    %v710 = vsel %vm709, 3.0, %v680
    %v711 = vsel %vm709, %v708, %v681
    %s712 = sld [smem:[#allocation6 + $0x13]]
    %v713 = vstv %s712
    %v714 = vmul.f32 %v66, %v713
    %s715 = sld [smem:[#allocation6 + $0x93]]
    %v716 = vstv %s715
    %v717 = vmul.f32 %v66, %v716
    %v719 = vrot.slane %v717, 1
    %v721 = vadd.f32 %v714, %v719
    %s722 = sld [smem:[#allocation6 + $0x113]]
    %v723 = vstv %s722
    %v724 = vmul.f32 %v66, %v723
    %v726 = vrot.slane %v724, 2
    %v728 = vadd.f32 %v721, %v726
    %s729 = sld [smem:[#allocation6 + $0x193]]
    %v730 = vstv %s729
    %v731 = vmul.f32 %v66, %v730
    %v733 = vrot.slane %v731, 3
    %v735 = vadd.f32 %v728, %v733
    %s736 = sld [smem:[#allocation7 + $0x13]]
    %v737 = vstv %s736
    %v738 = vadd.f32 %v735, %v737
    %vm739 = vcmp.gt.f32.partialorder %v738, %v711
    %v740 = vsel %vm739, 4.0, %v710
    %s741 = sld [smem:[#allocation6 + $0x14]]
    %v742 = vstv %s741
    %v743 = vmul.f32 %v66, %v742
    %s744 = sld [smem:[#allocation6 + $0x94]]
    %v745 = vstv %s744
    %v746 = vmul.f32 %v66, %v745
    %v748 = vrot.slane %v746, 1
    %v750 = vadd.f32 %v743, %v748
    %s751 = sld [smem:[#allocation6 + $0x114]]
    %v752 = vstv %s751
    %v753 = vmul.f32 %v66, %v752
    %v755 = vrot.slane %v753, 2
    %v757 = vadd.f32 %v750, %v755
    %s758 = sld [smem:[#allocation6 + $0x194]]
    %v759 = vstv %s758
    %v760 = vmul.f32 %v66, %v759
    %v762 = vrot.slane %v760, 3
    %v764 = vadd.f32 %v757, %v762
    %s765 = sld [smem:[#allocation7 + $0x14]]
    %v766 = vstv %s765
    %v767 = vadd.f32 %v764, %v766
    %s768 = sld [smem:[#allocation6 + $0x15]]
    %v769 = vstv %s768
    %v770 = vmul.f32 %v66, %v769
    %s771 = sld [smem:[#allocation6 + $0x95]]
    %v772 = vstv %s771
    %v773 = vmul.f32 %v66, %v772
    %v775 = vrot.slane %v773, 1
    %v777 = vadd.f32 %v770, %v775
    %s778 = sld [smem:[#allocation6 + $0x115]]
    %v779 = vstv %s778
    %v780 = vmul.f32 %v66, %v779
    %v782 = vrot.slane %v780, 2
    %v784 = vadd.f32 %v777, %v782
    %s785 = sld [smem:[#allocation6 + $0x195]]
    %v786 = vstv %s785
    %v787 = vmul.f32 %v66, %v786
    %v789 = vrot.slane %v787, 3
    %v791 = vadd.f32 %v784, %v789
    %s792 = sld [smem:[#allocation7 + $0x15]]
    %v793 = vstv %s792
    %v794 = vadd.f32 %v791, %v793
    %s795 = sld [smem:[#allocation6 + $0x16]]
    %v796 = vstv %s795
    %v797 = vmul.f32 %v66, %v796
    %s798 = sld [smem:[#allocation6 + $0x96]]
    %v799 = vstv %s798
    %v800 = vmul.f32 %v66, %v799
    %v802 = vrot.slane %v800, 1
    %v804 = vadd.f32 %v797, %v802
    %s805 = sld [smem:[#allocation6 + $0x116]]
    %v806 = vstv %s805
    %v807 = vmul.f32 %v66, %v806
    %v809 = vrot.slane %v807, 2
    %v811 = vadd.f32 %v804, %v809
    %s812 = sld [smem:[#allocation6 + $0x196]]
    %v813 = vstv %s812
    %v814 = vmul.f32 %v66, %v813
    %v816 = vrot.slane %v814, 3
    %v818 = vadd.f32 %v811, %v816
    %s819 = sld [smem:[#allocation7 + $0x16]]
    %v820 = vstv %s819
    %v821 = vadd.f32 %v818, %v820
    %s822 = sld [smem:[#allocation6 + $0x17]]
    %v823 = vstv %s822
    %v824 = vmul.f32 %v66, %v823
    %s825 = sld [smem:[#allocation6 + $0x97]]
    %v826 = vstv %s825
    %v827 = vmul.f32 %v66, %v826
    %v829 = vrot.slane %v827, 1
    %v831 = vadd.f32 %v824, %v829
    %s832 = sld [smem:[#allocation6 + $0x117]]
    %v833 = vstv %s832
    %v834 = vmul.f32 %v66, %v833
    %v836 = vrot.slane %v834, 2
    %v838 = vadd.f32 %v831, %v836
    %s839 = sld [smem:[#allocation6 + $0x197]]
    %v840 = vstv %s839
    %v841 = vmul.f32 %v66, %v840
    %v843 = vrot.slane %v841, 3
    %v845 = vadd.f32 %v838, %v843
    %s846 = sld [smem:[#allocation7 + $0x17]]
    %v847 = vstv %s846
    %v848 = vadd.f32 %v845, %v847
    %s849 = sld [smem:[#allocation6 + $0x18]]
    %v850 = vstv %s849
    %v851 = vmul.f32 %v66, %v850
    %s852 = sld [smem:[#allocation6 + $0x98]]
    %v853 = vstv %s852
    %v854 = vmul.f32 %v66, %v853
    %v856 = vrot.slane %v854, 1
    %v858 = vadd.f32 %v851, %v856
    %s859 = sld [smem:[#allocation6 + $0x118]]
    %v860 = vstv %s859
    %v861 = vmul.f32 %v66, %v860
    %v863 = vrot.slane %v861, 2
    %v865 = vadd.f32 %v858, %v863
    %s866 = sld [smem:[#allocation6 + $0x198]]
    %v867 = vstv %s866
    %v868 = vmul.f32 %v66, %v867
    %v870 = vrot.slane %v868, 3
    %v872 = vadd.f32 %v865, %v870
    %s873 = sld [smem:[#allocation7 + $0x18]]
    %v874 = vstv %s873
    %v875 = vadd.f32 %v872, %v874
    %v876 = vxor.u32 %v767, 2147483648
    %v877 = vmul.f32 %v876, 1.442695
    %v878 = vpow.pop %v877
    %v879 = vadd.f32 %v878, 1.0
    %v880 = vrcp.pop %v879
    %v881 = vmul.f32 1.0, %v880
    %v882 = vxor.u32 %v821, 2147483648
    %v883 = vmul.f32 %v882, 1.442695
    %v884 = vpow.pop %v883
    %v885 = vadd.f32 %v884, 1.0
    %v886 = vrcp.pop %v885
    %v887 = vmul.f32 1.0, %v886
    %v889 = vrot.slane %v887, 4
    %v891 = vadd.f32 %v66, %v889
    %v892 = vmul.f32 %v891, 32.0
    %v893 = vxor.u32 %v794, 2147483648
    %v894 = vmul.f32 %v893, 1.442695
    %v895 = vpow.pop %v894
    %v896 = vadd.f32 %v895, 1.0
    %v897 = vrcp.pop %v896
    %v898 = vmul.f32 1.0, %v897
    %v900 = vrot.slane %v898, 3
    %v902 = vadd.f32 %v66, %v900
    %v903 = vmul.f32 %v902, 32.0
    %s904 = sld [smem:[#allocation9 + $0x100]]
    %v905 = vmul.f32 %v848, 1.442695
    %v906 = vpow.pop %v905
    %v907 = vstv %s904
    %v908 = vmul.f32 %v907, %v906
    %s909 = sld [smem:[#allocation9 + $0x101]]
    %v910 = vmul.f32 %v875, 1.442695
    %v911 = vpow.pop %v910
    %v912 = vstv %s909
    %v913 = vmul.f32 %v912, %v911
    %v914 = vmul.f32 %v908, 0.5
    %v916 = vrot.slane %v914, 3
    %v918 = vsub.f32 %v903, %v916
    %v919 = vmul.f32 %v913, 0.5
    %v921 = vrot.slane %v919, 4
    %v923 = vsub.f32 %v892, %v921
    %v925 = vrot.slane %v908, 3
    %v927 = vadd.f32 %v918, %v925
    %v929 = vrot.slane %v913, 4
    %v931 = vadd.f32 %v923, %v929
    %s932 = sld [smem:[#allocation6 + $0x19]]
    %v933 = vstv %s932
    %v934 = vmul.f32 %v66, %v933
    %s935 = sld [smem:[#allocation6 + $0x99]]
    %v936 = vstv %s935
    %v937 = vmul.f32 %v66, %v936
    %v939 = vrot.slane %v937, 1
    %v941 = vadd.f32 %v934, %v939
    %s942 = sld [smem:[#allocation6 + $0x119]]
    %v943 = vstv %s942
    %v944 = vmul.f32 %v66, %v943
    %v946 = vrot.slane %v944, 2
    %v948 = vadd.f32 %v941, %v946
    %s949 = sld [smem:[#allocation6 + $0x199]]
    %v950 = vstv %s949
    %v951 = vmul.f32 %v66, %v950
    %v953 = vrot.slane %v951, 3
    %v955 = vadd.f32 %v948, %v953
    %s956 = sld [smem:[#allocation7 + $0x19]]
    %v957 = vstv %s956
    %v958 = vadd.f32 %v955, %v957
    %s959 = sld [smem:[#allocation6 + $0x1a]]
    %v960 = vstv %s959
    %v961 = vmul.f32 %v66, %v960
    %s962 = sld [smem:[#allocation6 + $0x9a]]
    %v963 = vstv %s962
    %v964 = vmul.f32 %v66, %v963
    %v966 = vrot.slane %v964, 1
    %v968 = vadd.f32 %v961, %v966
    %s969 = sld [smem:[#allocation6 + $0x11a]]
    %v970 = vstv %s969
    %v971 = vmul.f32 %v66, %v970
    %v973 = vrot.slane %v971, 2
    %v975 = vadd.f32 %v968, %v973
    %s976 = sld [smem:[#allocation6 + $0x19a]]
    %v977 = vstv %s976
    %v978 = vmul.f32 %v66, %v977
    %v980 = vrot.slane %v978, 3
    %v982 = vadd.f32 %v975, %v980
    %s983 = sld [smem:[#allocation7 + $0x1a]]
    %v984 = vstv %s983
    %v985 = vadd.f32 %v982, %v984
    %vm986 = vcmp.gt.f32.partialorder %v985, %v958
    %v987 = vsel %vm986, 1.0, 0.0
    %v988 = vsel %vm986, %v985, %v958
    %s989 = sld [smem:[#allocation6 + $0x1b]]
    %v990 = vstv %s989
    %v991 = vmul.f32 %v66, %v990
    %s992 = sld [smem:[#allocation6 + $0x9b]]
    %v993 = vstv %s992
    %v994 = vmul.f32 %v66, %v993
    %v996 = vrot.slane %v994, 1
    %v998 = vadd.f32 %v991, %v996
    %s999 = sld [smem:[#allocation6 + $0x11b]]
    %v1000 = vstv %s999
    %v1001 = vmul.f32 %v66, %v1000
    %v1003 = vrot.slane %v1001, 2
    %v1005 = vadd.f32 %v998, %v1003
    %s1006 = sld [smem:[#allocation6 + $0x19b]]
    %v1007 = vstv %s1006
    %v1008 = vmul.f32 %v66, %v1007
    %v1010 = vrot.slane %v1008, 3
    %v1012 = vadd.f32 %v1005, %v1010
    %s1013 = sld [smem:[#allocation7 + $0x1b]]
    %v1014 = vstv %s1013
    %v1015 = vadd.f32 %v1012, %v1014
    %vm1016 = vcmp.gt.f32.partialorder %v1015, %v988
    %v1017 = vsel %vm1016, 2.0, %v987
    %v1018 = vsel %vm1016, %v1015, %v988
    %s1019 = sld [smem:[#allocation6 + $0x1c]]
    %v1020 = vstv %s1019
    %v1021 = vmul.f32 %v66, %v1020
    %s1022 = sld [smem:[#allocation6 + $0x9c]]
    %v1023 = vstv %s1022
    %v1024 = vmul.f32 %v66, %v1023
    %v1026 = vrot.slane %v1024, 1
    %v1028 = vadd.f32 %v1021, %v1026
    %s1029 = sld [smem:[#allocation6 + $0x11c]]
    %v1030 = vstv %s1029
    %v1031 = vmul.f32 %v66, %v1030
    %v1033 = vrot.slane %v1031, 2
    %v1035 = vadd.f32 %v1028, %v1033
    %s1036 = sld [smem:[#allocation6 + $0x19c]]
    %v1037 = vstv %s1036
    %v1038 = vmul.f32 %v66, %v1037
    %v1040 = vrot.slane %v1038, 3
    %v1042 = vadd.f32 %v1035, %v1040
    %s1043 = sld [smem:[#allocation7 + $0x1c]]
    %v1044 = vstv %s1043
    %v1045 = vadd.f32 %v1042, %v1044
    %vm1046 = vcmp.gt.f32.partialorder %v1045, %v1018
    %v1047 = vsel %vm1046, 3.0, %v1017
    %v1048 = vsel %vm1046, %v1045, %v1018
    %s1049 = sld [smem:[#allocation6 + $0x1d]]
    %v1050 = vstv %s1049
    %v1051 = vmul.f32 %v66, %v1050
    %s1052 = sld [smem:[#allocation6 + $0x9d]]
    %v1053 = vstv %s1052
    %v1054 = vmul.f32 %v66, %v1053
    %v1056 = vrot.slane %v1054, 1
    %v1058 = vadd.f32 %v1051, %v1056
    %s1059 = sld [smem:[#allocation6 + $0x11d]]
    %v1060 = vstv %s1059
    %v1061 = vmul.f32 %v66, %v1060
    %v1063 = vrot.slane %v1061, 2
    %v1065 = vadd.f32 %v1058, %v1063
    %s1066 = sld [smem:[#allocation6 + $0x19d]]
    %v1067 = vstv %s1066
    %v1068 = vmul.f32 %v66, %v1067
    %v1070 = vrot.slane %v1068, 3
    %v1072 = vadd.f32 %v1065, %v1070
    %s1073 = sld [smem:[#allocation7 + $0x1d]]
    %v1074 = vstv %s1073
    %v1075 = vadd.f32 %v1072, %v1074
    %vm1076 = vcmp.gt.f32.partialorder %v1075, %v1048
    %v1077 = vsel %vm1076, 4.0, %v1047
    %v1079 = vrot.slane %v244, 4
    %v1082 = vrot.slane %v249, 2
    %v1085 = vrot.slane %v253, 2
    %v1088 = vrot.slane %v403, 3
    %v1091 = vrot.slane %v93, 2
    %v1094 = vrot.slane %v581, 4
    %v1097 = vrot.slane %v586, 2
    %v1100 = vrot.slane %v590, 2
    %v1103 = vrot.slane %v740, 3
    %v1106 = vrot.slane %v430, 2
    %vm1108 = vcmask 1040384
    %v1109 = vsel %vm1108, %v207, %v1079
    %vm1110 = vcmask 1041408
    %v1111 = vsel %vm1110, %v1109, %v1082
    %vm1112 = vcmask 1042432
    %v1113 = vsel %vm1112, %v1111, %v1085
    %vm1114 = vcmask 1043456
    %v1115 = vsel %vm1114, %v1113, %v257
    %vm1116 = vcmask 1044480
    %v1117 = vsel %vm1116, %v1115, %v1088
    %vm1118 = vcmask 1045504
    %v1119 = vsel %vm1118, %v1117, %v1091
    %vm1120 = vcmask 1046528
    %v1121 = vsel %vm1120, %v1119, 0.0
    %v1122 = vsel %vm1108, %v544, %v1094
    %v1123 = vsel %vm1110, %v1122, %v1097
    %v1124 = vsel %vm1112, %v1123, %v1100
    %v1125 = vsel %vm1114, %v1124, %v594
    %v1126 = vsel %vm1116, %v1125, %v1103
    %v1127 = vsel %vm1118, %v1126, %v1106
    %v1128 = vsel %vm1120, %v1127, 0.0
    %v1130 = vrot.slane %v918, 4
    %v1133 = vrot.slane %v923, 2
    %v1136 = vrot.slane %v927, 2
    %v1139 = vrot.slane %v1077, 3
    %v1142 = vrot.slane %v767, 2
    %v1144 = vsel %vm1108, %v881, %v1130
    %v1145 = vsel %vm1110, %v1144, %v1133
    %v1146 = vsel %vm1112, %v1145, %v1136
    %v1147 = vsel %vm1114, %v1146, %v931
    %v1148 = vsel %vm1116, %v1147, %v1139
    %v1149 = vsel %vm1118, %v1148, %v1142
    %v1150 = vsel %vm1120, %v1149, 0.0
    %1151 = vst [vmem:[#allocation10] sm:$0xff] %v1121
    %1152 = vst [vmem:[#allocation10 + $0x8] sm:$0xff] %v1128
    %1153 = vst [vmem:[#allocation10 + $0x10] sm:$0xff] %v1150
    // Predicated region
    $region34: #{tpu_custom_call.1} parent=1 // pred_check
      _
    $region35: #{tpu_custom_call.1} parent=1 // pred_check_branch
      %1155 = sbr.rel (0) target = $region37
    $region36: #{tpu_custom_call.1} parent=1 // pred_region
      %s1157 = ssub.s32 384, 384
      %1158 = vsyncadd [#allocation4], %s1157
      %s1159 = sshll.u32 [#allocation10], 4
      %s1160 = int_to_ptr.vmem [resolvable:$true] %s1159
      %1165 = dma.vmem_to_hbm [thread:$0]  %s1160, 384, %s4, [#allocation4], 128, 128, 8
    $region37: #{tpu_custom_call.1} parent=1 // pred_fallthru
      _
    // Predicated region
    $region38: #{tpu_custom_call.1} parent=1 // pred_check
      _
    $region39: #{tpu_custom_call.1} parent=1 // pred_check_branch
      %1167 = sbr.rel (0) target = $region41
    $region40: #{tpu_custom_call.1} parent=1 // pred_region
      %1168 = dma.done [#allocation4], 384
    $region41: #{tpu_custom_call.1} parent=1 // pred_fallthru
      _
    %1169 = vsyncpa [#allocation3], 1
    %1170 = vsyncpa [#allocation4], 1
    %1171 = vsyncpa [#allocation5], 1
    %1172 = vsyncpa [#allocation8], 1

</llo_original>
